<compile_context>
chip_gen: v7x
topology: tpu7x:2x2x1
jax: 0.10.0
libtpu: 0.0.40
codegen_flags: <defaults>
</compile_context>

<pallas_src>
import functools

import numpy as np

import jax
import jax.numpy as jnp
from jax.experimental import pallas as pl
from jax.experimental.pallas import tpu as pltpu


# ----------------------------- model definition -----------------------------
# VisionNetwork filter stack for a 16x16x4 observation:
#   (out_channels, kernel, stride, padding)
FILTERS = [(8, 4, 2, "same"),    # 16x16 -> 8x8
           (16, 4, 2, "same"),   # 8x8   -> 4x4
           (32, 4, 1, "valid")]  # 4x4   -> 1x1
NUM_OUTPUTS = 7                  # action logits
OBS_HW = (16, 16)
OBS_CHANNELS = 4
LANE = 128                       # TPU lane width; narrow dims padded up to it


def _round_up(x, m):
    return (x + m - 1) // m * m


def _same_padding(in_size, kernel, stride):
    # RLlib same_padding: out = ceil(in / stride)
    out = -(-in_size // stride)
    pad_total = max((out - 1) * stride + kernel - in_size, 0)
    pad_before = pad_total // 2
    return (pad_before, pad_total - pad_before)


# ------------------------- torch-layout param init ---------------------------
def init_params(key, in_channels):
    """Random weights in torch.nn.Conv2d layout: [Cout, Cin, kh, kw]."""
    params = []
    cin = in_channels
    for idx, (cout, k, _s, _p) in enumerate(FILTERS):
        kw_key, kb_key = jax.random.split(jax.random.fold_in(key, idx))
        w = 0.05 * jax.random.normal(kw_key, (cout, cin, k, k), jnp.float32)
        b = 0.05 * jax.random.normal(kb_key, (cout,), jnp.float32)
        params.append((w, b))
        cin = cout
    lw_key, lb_key = jax.random.split(jax.random.fold_in(key, 999))
    w_logits = 0.05 * jax.random.normal(lw_key, (NUM_OUTPUTS, cin, 1, 1), jnp.float32)
    b_logits = 0.05 * jax.random.normal(lb_key, (NUM_OUTPUTS,), jnp.float32)
    params.append((w_logits, b_logits))
    return params


# ---------------- conv -> dense (zero-stuffed im2col folded into W) ----------
def _conv_as_dense(w_torch, b, in_hw, stride, padding_mode):
    """Lower a torch Conv2d to a dense matrix on the HWC-flattened activation.

    Returns (W_dense [H*W*Cin, Ho*Wo*Cout], b_dense [Ho*Wo*Cout], (Ho, Wo)).
    Exactly reproduces cross-correlation with RLlib same/valid zero padding;
    extra entries are exact zeros, so x_flat @ W_dense + b_dense equals the
    conv output flattened in (oh, ow, co) order.  One-time host-side prep.
    """
    w_np = np.asarray(w_torch)                    # [Cout, Cin, kh, kw]
    cout, cin, kh, kw = w_np.shape
    H, W = in_hw
    if padding_mode == "same":
        Ho, Wo = -(-H // stride), -(-W // stride)
        ph0 = _same_padding(H, kh, stride)[0]
        pw0 = _same_padding(W, kw, stride)[0]
    else:  # "valid"
        Ho, Wo = (H - kh) // stride + 1, (W - kw) // stride + 1
        ph0 = pw0 = 0
    w_hwio = w_np.transpose(2, 3, 1, 0)           # [kh, kw, Cin, Cout]
    dense = np.zeros((H, W, cin, Ho, Wo, cout), np.float32)
    for oh in range(Ho):
        for i in range(kh):
            h = oh * stride + i - ph0
            if not 0 <= h < H:                    # zero padding -> contributes 0
                continue
            for ow in range(Wo):
                for j in range(kw):
                    w_in = ow * stride + j - pw0
                    if not 0 <= w_in < W:
                        continue
                    dense[h, w_in, :, oh, ow, :] = w_hwio[i, j]
    w_dense = dense.reshape(H * W * cin, Ho * Wo * cout)
    b_dense = np.tile(np.asarray(b, np.float32)[None, :], (Ho * Wo, 1)).reshape(-1)
    return w_dense, b_dense, (Ho, Wo)


def prepare_dense_params(torch_params):
    """One-time prep: conv stack -> fused-MLP weights, lane-padded to 128.

    Weights are stored in bf16 (native MXU input dtype); biases stay f32 and
    are pre-reshaped to (1, N).
    """
    (w1, b1), (w2, b2), (w3, b3), (w4, b4) = torch_params
    W1, B1, hw1 = _conv_as_dense(w1, b1, OBS_HW, 2, "same")   # [1024, 512]
    W2, B2, hw2 = _conv_as_dense(w2, b2, hw1, 2, "same")      # [512, 256]
    W3, B3, hw3 = _conv_as_dense(w3, b3, hw2, 1, "valid")     # [256, 32]
    assert hw3 == (1, 1)
    # final 1x1 logits conv == plain matmul [32 -> 7]
    W4 = np.asarray(w4).reshape(NUM_OUTPUTS, -1).T            # [32, 7]
    B4 = np.asarray(b4, np.float32)                           # [7]

    # Lane-pad narrow output dims (32, 7) up to 128 so every matmul in the
    # fused kernel has K and N multiples of 128 (no masked vld/vst).
    k3, n3 = W3.shape
    W3p = np.zeros((k3, LANE), np.float32); W3p[:, :n3] = W3
    B3p = np.zeros((LANE,), np.float32);    B3p[:n3] = B3
    k4, n4 = W4.shape
    W4p = np.zeros((LANE, LANE), np.float32); W4p[:k4, :n4] = W4
    B4p = np.zeros((LANE,), np.float32);      B4p[:n4] = B4

    def w_dev(x):
        return jnp.asarray(x, jnp.bfloat16)       # MXU-native weight dtype

    def b_dev(x):
        return jnp.asarray(x, jnp.float32)[None, :]   # (1, N) once, not per call

    return (w_dev(W1), b_dev(B1),
            w_dev(W2), b_dev(B2),
            w_dev(W3p), b_dev(B3p),
            w_dev(W4p), b_dev(B4p))


# ----------------------------- fused Pallas kernel ---------------------------
def _fused_vision_kernel(x_ref, w1_ref, b1_ref, w2_ref, b2_ref,
                         w3_ref, b3_ref, w4_ref, b4_ref, o_ref):
    """Entire network for one batch tile; activations never leave VMEM.

    obs.float() happens here (in-kernel cast of the native-dtype tile); all
    matmuls are bf16 x bf16 -> f32 accumulate on the MXU; bias-add / ReLU stay
    in f32 on the VPU (v5e has no bf16 vector ALU).
    """
    h = x_ref[...].astype(jnp.bfloat16)                               # [TM, 1024]
    a = jnp.dot(h, w1_ref[...], preferred_element_type=jnp.float32) + b1_ref[...]
    h = jnp.maximum(a, 0.0).astype(jnp.bfloat16)                      # [TM, 512]
    a = jnp.dot(h, w2_ref[...], preferred_element_type=jnp.float32) + b2_ref[...]
    h = jnp.maximum(a, 0.0).astype(jnp.bfloat16)                      # [TM, 256]
    a = jnp.dot(h, w3_ref[...], preferred_element_type=jnp.float32) + b3_ref[...]
    h = jnp.maximum(a, 0.0).astype(jnp.bfloat16)                      # [TM, 128]
    out = jnp.dot(h, w4_ref[...], preferred_element_type=jnp.float32) + b4_ref[...]
    o_ref[...] = out.astype(o_ref.dtype)                              # [TM, 128]


# ------------------------------ batch tiling ---------------------------------
def _choose_batch_tiling(batch, tile_m, sub):
    """Pick (padded_batch, batch_tile).

    Prefers a tile that exactly divides the sublane-rounded batch (no
    whole-batch jnp.pad copy); caps the tile at ~batch/2 for batches >= 256 so
    the "parallel" grid axis has >= 2 tiles (v7x megacore has 2 TensorCores).
    `sub` is the sublane granularity for the obs dtype (8 for f32).
    """
    bp = _round_up(batch, sub)                      # tiny sublane-alignment pad
    cap = tile_m
    if bp >= 256:                                   # enough rows to split over 2 TCs
        cap = min(cap, _round_up(-(-bp // 2), sub))
    cap = max(sub, min(cap, bp))
    cap = (cap // sub) * sub
    tm = sub
    for cand in range(cap, sub - 1, -sub):          # largest divisor of bp <= cap
        if bp % cand == 0:
            tm = cand
            break
    if tm < 128 and bp > 8 * tile_m:
        # Awkward batch (e.g. 8 * prime): a one-off pad beats hundreds of tiny
        # grid steps (~0.35 us each).
        tm = cap
        bp = _round_up(bp, tm)
    return bp, tm


# ------------------------------ Model_Vision forward -------------------------
@functools.partial(jax.jit, static_argnames=("tile_m",))
def model_vision_forward(dense_params, obs, tile_m=512):
    """Model_Vision.forward: obs.float() -> VisionNetwork -> (logits, [])."""
    W1, B1, W2, B2, W3, B3, W4, B4 = dense_params
    batch = obs.shape[0]
    x = obs.reshape(batch, -1)                  # NHWC flatten; NO wrapper cast —
    k1 = x.shape[1]                             # the kernel casts the VMEM tile.

    itemsize = np.dtype(obs.dtype).itemsize
    sub = 8 * max(1, 4 // itemsize)             # sublane packing for obs dtype
    bp, tm = _choose_batch_tiling(batch, tile_m, sub)
    if bp != batch:
        x = jnp.pad(x, ((0, bp - batch), (0, 0)))

    n_out = W4.shape[1]                         # 128 (lane-padded logits)
    flops = 2 * bp * sum(int(w.shape[0]) * int(w.shape[1]) for w in (W1, W2, W3, W4))
    param_bytes = sum(int(a.size) * np.dtype(a.dtype).itemsize
                      for a in (W1, B1, W2, B2, W3, B3, W4, B4))
    bytes_accessed = bp * k1 * itemsize + bp * n_out * 4 + param_bytes

    out = pl.pallas_call(
        _fused_vision_kernel,
        out_shape=jax.ShapeDtypeStruct((bp, n_out), jnp.float32),
        grid=(bp // tm,),
        in_specs=[
            pl.BlockSpec((tm, k1), lambda i: (i, 0)),          # batch-tiled obs
            # weights / biases: whole-array blocks, constant index_map ->
            # VMEM-resident across batch tiles.
            pl.BlockSpec(W1.shape, lambda i: (0, 0)),
            pl.BlockSpec(B1.shape, lambda i: (0, 0)),
            pl.BlockSpec(W2.shape, lambda i: (0, 0)),
            pl.BlockSpec(B2.shape, lambda i: (0, 0)),
            pl.BlockSpec(W3.shape, lambda i: (0, 0)),
            pl.BlockSpec(B3.shape, lambda i: (0, 0)),
            pl.BlockSpec(W4.shape, lambda i: (0, 0)),
            pl.BlockSpec(B4.shape, lambda i: (0, 0)),
        ],
        out_specs=pl.BlockSpec((tm, n_out), lambda i: (i, 0)),
        compiler_params=pltpu.CompilerParams(
            dimension_semantics=("parallel",),   # batch tiles shard over TCs (v7x)
            vmem_limit_bytes=32 * 1024 * 1024),
        cost_estimate=pl.CostEstimate(flops=flops, transcendentals=0,
                                      bytes_accessed=bytes_accessed),
    )(x, W1, B1, W2, B2, W3, B3, W4, B4)

    logits = out[:batch, :NUM_OUTPUTS]          # slice stays inside this jit
    # TODO(synk): value_function() (shared trunk + value head) is not part of
    # forward() and is not implemented here.
    return logits, []


# ------------------------------ pure-JAX reference ---------------------------
def _reference_forward(torch_params, obs):
    """XLA f32 conv reference (explicit RLlib padding) for the self-check."""
    x = obs.astype(jnp.float32)
    layer_specs = [(k, s, p) for (_c, k, s, p) in FILTERS] + [(1, 1, "valid")]
    for idx, ((w, b), (k, s, pad_mode)) in enumerate(zip(torch_params, layer_specs)):
        if pad_mode == "same":
            ph = _same_padding(x.shape[1], k, s)
            pw = _same_padding(x.shape[2], k, s)
            x = jnp.pad(x, ((0, 0), ph, pw, (0, 0)))
        w_hwio = jnp.transpose(w, (2, 3, 1, 0))
        x = jax.lax.conv_general_dilated(
            x, w_hwio, window_strides=(s, s), padding="VALID",
            dimension_numbers=("NHWC", "HWIO", "NHWC"),
            precision=jax.lax.Precision.HIGHEST) + b
        if idx < len(torch_params) - 1:
            x = jnp.maximum(x, 0.0)
    return x.reshape(x.shape[0], -1)


if __name__ == "__main__":
    key = jax.random.PRNGKey(0)
    k_obs, k_par = jax.random.split(key)
    obs = jax.random.normal(k_obs, (2, OBS_HW[0], OBS_HW[1], OBS_CHANNELS), jnp.float32)
    torch_params = init_params(k_par, in_channels=OBS_CHANNELS)
    dense_params = prepare_dense_params(torch_params)     # one-time host prep

    logits, state = model_vision_forward(dense_params, obs)
    logits = jax.block_until_ready(logits)
    assert logits.shape == (2, NUM_OUTPUTS) and logits.dtype == jnp.float32
    assert state == []

    ref = np.asarray(_reference_forward(torch_params, obs))
    err = np.abs(np.asarray(logits) - ref).max()
    # bf16-MXU matmuls vs f32 XLA reference: tolerance sized for bf16 rounding
    # (structural bugs produce errors >> 1e-2 on these ~0.05-magnitude logits).
    assert np.allclose(np.asarray(logits), ref, rtol=1e-2, atol=1e-2), err
    print("KERNEL_OK")
</pallas_src>

<mosaic_0001>
module attributes {stable_mosaic.version = 11 : i64} {
  func.func @_fused_vision_kernel(%arg0: i32, %arg1: memref<8x1024xf32, #tpu.memory_space<vmem>>, %arg2: memref<1024x512xbf16, #tpu.memory_space<vmem>>, %arg3: memref<1x512xf32, #tpu.memory_space<vmem>>, %arg4: memref<512x256xbf16, #tpu.memory_space<vmem>>, %arg5: memref<1x256xf32, #tpu.memory_space<vmem>>, %arg6: memref<256x128xbf16, #tpu.memory_space<vmem>>, %arg7: memref<1x128xf32, #tpu.memory_space<vmem>>, %arg8: memref<128x128xbf16, #tpu.memory_space<vmem>>, %arg9: memref<1x128xf32, #tpu.memory_space<vmem>>, %arg10: memref<8x128xf32, #tpu.memory_space<vmem>>) attributes {dimension_semantics = [#tpu.dimension_semantics<parallel>], iteration_bounds = array<i64: 1>, scalar_prefetch = 0 : i64, scratch_operands = 0 : i64, tpu.core_type = #tpu.core_type<tc>, window_params = [{transform_indices = @transform_0, window_bounds = array<i64: 8, 1024>}, {pipeline_mode = #tpu.pipeline_mode<synchronous>, transform_indices = @transform_1, window_bounds = array<i64: 1024, 512>}, {pipeline_mode = #tpu.pipeline_mode<synchronous>, transform_indices = @transform_2, window_bounds = array<i64: 1, 512>}, {pipeline_mode = #tpu.pipeline_mode<synchronous>, transform_indices = @transform_3, window_bounds = array<i64: 512, 256>}, {pipeline_mode = #tpu.pipeline_mode<synchronous>, transform_indices = @transform_4, window_bounds = array<i64: 1, 256>}, {pipeline_mode = #tpu.pipeline_mode<synchronous>, transform_indices = @transform_5, window_bounds = array<i64: 256, 128>}, {pipeline_mode = #tpu.pipeline_mode<synchronous>, transform_indices = @transform_6, window_bounds = array<i64: 1, 128>}, {pipeline_mode = #tpu.pipeline_mode<synchronous>, transform_indices = @transform_7, window_bounds = array<i64: 128, 128>}, {pipeline_mode = #tpu.pipeline_mode<synchronous>, transform_indices = @transform_8, window_bounds = array<i64: 1, 128>}, {transform_indices = @transform_9, window_bounds = array<i64: 8, 128>}]} {
    %c0 = arith.constant 0 : index
    %c0_0 = arith.constant 0 : index
    %0 = vector.load %arg1[%c0, %c0_0] : memref<8x1024xf32, #tpu.memory_space<vmem>>, vector<8x1024xf32>
    %1 = arith.truncf %0 : vector<8x1024xf32> to vector<8x1024xbf16>
    %c0_1 = arith.constant 0 : index
    %c0_2 = arith.constant 0 : index
    %2 = vector.load %arg2[%c0_1, %c0_2] : memref<1024x512xbf16, #tpu.memory_space<vmem>>, vector<1024x512xbf16>
    %cst = arith.constant dense<0.000000e+00> : vector<8x512xf32>
    %3 = tpu.matmul %1, %2, %cst {dimension_numbers = #tpu.dot_dimension_numbers<[1], [0], [0], [1], [0, 0, 1, 1], [], []>} : vector<8x1024xbf16>, vector<1024x512xbf16>, vector<8x512xf32> -> vector<8x512xf32>
    %c0_3 = arith.constant 0 : index
    %c0_4 = arith.constant 0 : index
    %4 = vector.load %arg3[%c0_3, %c0_4] : memref<1x512xf32, #tpu.memory_space<vmem>>, vector<1x512xf32>
    %5 = vector.broadcast %4 : vector<1x512xf32> to vector<8x512xf32>
    %6 = arith.addf %3, %5 : vector<8x512xf32>
    %cst_5 = arith.constant 0.000000e+00 : f32
    %7 = vector.broadcast %cst_5 : f32 to vector<8x512xf32>
    %8 = arith.maximumf %6, %7 : vector<8x512xf32>
    %9 = arith.truncf %8 : vector<8x512xf32> to vector<8x512xbf16>
    %c0_6 = arith.constant 0 : index
    %c0_7 = arith.constant 0 : index
    %10 = vector.load %arg4[%c0_6, %c0_7] : memref<512x256xbf16, #tpu.memory_space<vmem>>, vector<512x256xbf16>
    %cst_8 = arith.constant dense<0.000000e+00> : vector<8x256xf32>
    %11 = tpu.matmul %9, %10, %cst_8 {dimension_numbers = #tpu.dot_dimension_numbers<[1], [0], [0], [1], [0, 0, 1, 1], [], []>} : vector<8x512xbf16>, vector<512x256xbf16>, vector<8x256xf32> -> vector<8x256xf32>
    %c0_9 = arith.constant 0 : index
    %c0_10 = arith.constant 0 : index
    %12 = vector.load %arg5[%c0_9, %c0_10] : memref<1x256xf32, #tpu.memory_space<vmem>>, vector<1x256xf32>
    %13 = vector.broadcast %12 : vector<1x256xf32> to vector<8x256xf32>
    %14 = arith.addf %11, %13 : vector<8x256xf32>
    %cst_11 = arith.constant 0.000000e+00 : f32
    %15 = vector.broadcast %cst_11 : f32 to vector<8x256xf32>
    %16 = arith.maximumf %14, %15 : vector<8x256xf32>
    %17 = arith.truncf %16 : vector<8x256xf32> to vector<8x256xbf16>
    %c0_12 = arith.constant 0 : index
    %c0_13 = arith.constant 0 : index
    %18 = vector.load %arg6[%c0_12, %c0_13] : memref<256x128xbf16, #tpu.memory_space<vmem>>, vector<256x128xbf16>
    %cst_14 = arith.constant dense<0.000000e+00> : vector<8x128xf32>
    %19 = tpu.matmul %17, %18, %cst_14 {dimension_numbers = #tpu.dot_dimension_numbers<[1], [0], [0], [1], [0, 0, 1, 1], [], []>} : vector<8x256xbf16>, vector<256x128xbf16>, vector<8x128xf32> -> vector<8x128xf32>
    %c0_15 = arith.constant 0 : index
    %c0_16 = arith.constant 0 : index
    %20 = vector.load %arg7[%c0_15, %c0_16] : memref<1x128xf32, #tpu.memory_space<vmem>>, vector<1x128xf32>
    %21 = vector.broadcast %20 : vector<1x128xf32> to vector<8x128xf32>
    %22 = arith.addf %19, %21 : vector<8x128xf32>
    %cst_17 = arith.constant 0.000000e+00 : f32
    %23 = vector.broadcast %cst_17 : f32 to vector<8x128xf32>
    %24 = arith.maximumf %22, %23 : vector<8x128xf32>
    %25 = arith.truncf %24 : vector<8x128xf32> to vector<8x128xbf16>
    %c0_18 = arith.constant 0 : index
    %c0_19 = arith.constant 0 : index
    %26 = vector.load %arg8[%c0_18, %c0_19] : memref<128x128xbf16, #tpu.memory_space<vmem>>, vector<128x128xbf16>
    %cst_20 = arith.constant dense<0.000000e+00> : vector<8x128xf32>
    %27 = tpu.matmul %25, %26, %cst_20 {dimension_numbers = #tpu.dot_dimension_numbers<[1], [0], [0], [1], [0, 0, 1, 1], [], []>} : vector<8x128xbf16>, vector<128x128xbf16>, vector<8x128xf32> -> vector<8x128xf32>
    %c0_21 = arith.constant 0 : index
    %c0_22 = arith.constant 0 : index
    %28 = vector.load %arg9[%c0_21, %c0_22] : memref<1x128xf32, #tpu.memory_space<vmem>>, vector<1x128xf32>
    %29 = vector.broadcast %28 : vector<1x128xf32> to vector<8x128xf32>
    %30 = arith.addf %27, %29 : vector<8x128xf32>
    %c0_23 = arith.constant 0 : index
    %c0_24 = arith.constant 0 : index
    %31 = vector.load %arg10[%c0_23, %c0_24] : memref<8x128xf32, #tpu.memory_space<vmem>>, vector<8x128xf32>
    tpu.vector_store %arg10[%c0_23, %c0_24], %30 {strides = array<i32>} : memref<8x128xf32, #tpu.memory_space<vmem>>, vector<8x128xf32>,
    return
  }
  func.func @transform_0(%arg0: i32) -> (i32, i32) {
    %c0_i32 = arith.constant 0 : i32
    %c0_i32_0 = arith.constant 0 : i32
    return %arg0, %c0_i32 : i32, i32
  }
  func.func @transform_1(%arg0: i32) -> (i32, i32) {
    %c0_i32 = arith.constant 0 : i32
    %c0_i32_0 = arith.constant 0 : i32
    %c0_i32_1 = arith.constant 0 : i32
    return %c0_i32, %c0_i32_0 : i32, i32
  }
  func.func @transform_2(%arg0: i32) -> (i32, i32) {
    %c0_i32 = arith.constant 0 : i32
    %c0_i32_0 = arith.constant 0 : i32
    %c0_i32_1 = arith.constant 0 : i32
    return %c0_i32, %c0_i32_0 : i32, i32
  }
  func.func @transform_3(%arg0: i32) -> (i32, i32) {
    %c0_i32 = arith.constant 0 : i32
    %c0_i32_0 = arith.constant 0 : i32
    %c0_i32_1 = arith.constant 0 : i32
    return %c0_i32, %c0_i32_0 : i32, i32
  }
  func.func @transform_4(%arg0: i32) -> (i32, i32) {
    %c0_i32 = arith.constant 0 : i32
    %c0_i32_0 = arith.constant 0 : i32
    %c0_i32_1 = arith.constant 0 : i32
    return %c0_i32, %c0_i32_0 : i32, i32
  }
  func.func @transform_5(%arg0: i32) -> (i32, i32) {
    %c0_i32 = arith.constant 0 : i32
    %c0_i32_0 = arith.constant 0 : i32
    %c0_i32_1 = arith.constant 0 : i32
    return %c0_i32, %c0_i32_0 : i32, i32
  }
  func.func @transform_6(%arg0: i32) -> (i32, i32) {
    %c0_i32 = arith.constant 0 : i32
    %c0_i32_0 = arith.constant 0 : i32
    %c0_i32_1 = arith.constant 0 : i32
    return %c0_i32, %c0_i32_0 : i32, i32
  }
  func.func @transform_7(%arg0: i32) -> (i32, i32) {
    %c0_i32 = arith.constant 0 : i32
    %c0_i32_0 = arith.constant 0 : i32
    %c0_i32_1 = arith.constant 0 : i32
    return %c0_i32, %c0_i32_0 : i32, i32
  }
  func.func @transform_8(%arg0: i32) -> (i32, i32) {
    %c0_i32 = arith.constant 0 : i32
    %c0_i32_0 = arith.constant 0 : i32
    %c0_i32_1 = arith.constant 0 : i32
    return %c0_i32, %c0_i32_0 : i32, i32
  }
  func.func @transform_9(%arg0: i32) -> (i32, i32) {
    %c0_i32 = arith.constant 0 : i32
    %c0_i32_0 = arith.constant 0 : i32
    return %arg0, %c0_i32 : i32, i32
  }
}

</mosaic_0001>

<llo_original>
// kernel: model_vision_forward.1
$region0: #{model_vision_forward.1}
  #allocation0 [shape = 'u32[]', space=smem, size = 0x4, offset = 0x4, fixed_abs, tag = 'smem constant byte address 0x4 - core index']
  #allocation1 [shape = 'u32[144,128]{1,0:T(1,128)}', space=vmem, size = 0x12000, scoped, tag = 'internal scratch']
  %s0 = inlined_call_operand.vmem [shape: f32[8,1024], index: 0, kind: input, shape index: {}]
  %s1 = inlined_call_operand.hbm [shape: bf16[1024,512], index: 1, kind: input, shape index: {}]
  %s2 = inlined_call_operand.vmem [shape: f32[1,512], index: 2, kind: input, shape index: {}]
  %s3 = inlined_call_operand.vmem [shape: bf16[512,256], index: 3, kind: input, shape index: {}]
  %s4 = inlined_call_operand.vmem [shape: f32[1,256], index: 4, kind: input, shape index: {}]
  %s5 = inlined_call_operand.vmem [shape: bf16[256,128], index: 5, kind: input, shape index: {}]
  %s6 = inlined_call_operand.vmem [shape: f32[1,128], index: 6, kind: input, shape index: {}]
  %s7 = inlined_call_operand.vmem [shape: bf16[128,128], index: 7, kind: input, shape index: {}]
  %s8 = inlined_call_operand.vmem [shape: f32[1,128], index: 8, kind: input, shape index: {}]
  %s9 = inlined_call_operand.vmem [shape: f32[8,128], index: 9, kind: output, shape index: {}]
  %s10 = sld [smem:[#allocation0]]
  $region50: #{model_vision_forward.1} parent=0
    _
  %s12 = ssub.s32 1, %s10
  %s13 = scalar_select 0, %s12, %s10
  $region1: #{model_vision_forward.1} parent=0
    #allocation2 [shape = 'u8[1048576]{0}', space=vmem, size = 0x100000, scoped, tag = 'input window, operand 1, single buffered']
    #allocation3 [shape = 's32[1]{0}', space=sflag, size = 0x4, scoped, tag = 'scoped memory for model_vision_forward.1']
    %14 = vsyncpa [#allocation3], 0
    // Predicated region
    $region2: #{model_vision_forward.1} parent=1 // pred_check
      _
    $region3: #{model_vision_forward.1} parent=1 // pred_check_branch
      %16 = sbr.rel (0) target = $region5
    $region4: #{model_vision_forward.1} parent=1 // pred_region
      _
    $region5: #{model_vision_forward.1} parent=1 // pred_fallthru
      _
    // Predicated region
    $region6: #{model_vision_forward.1} parent=1 // pred_check
      _
    $region7: #{model_vision_forward.1} parent=1 // pred_check_branch
      %18 = sbr.rel (0) target = $region9
    $region8: #{model_vision_forward.1} parent=1 // pred_region
      %s20 = ssub.s32 32768, 32768
      %21 = vsyncadd [#allocation3], %s20
      %s22 = sshll.u32 [#allocation2], 4
      %s23 = int_to_ptr.vmem [resolvable:$true] %s22
      %28 = dma.hbm_to_vmem [thread:$0]  %s1, 32768, %s23, [#allocation3], 256, 256, 16
    $region9: #{model_vision_forward.1} parent=1 // pred_fallthru
      _
    // Predicated region
    $region10: #{model_vision_forward.1} parent=1 // pred_check
      _
    $region11: #{model_vision_forward.1} parent=1 // pred_check_branch
      %30 = sbr.rel (0) target = $region13
    $region12: #{model_vision_forward.1} parent=1 // pred_region
      _
    $region13: #{model_vision_forward.1} parent=1 // pred_fallthru
      _
    // Predicated region
    $region14: #{model_vision_forward.1} parent=1 // pred_check
      _
    $region15: #{model_vision_forward.1} parent=1 // pred_check_branch
      %32 = sbr.rel (0) target = $region17
    $region16: #{model_vision_forward.1} parent=1 // pred_region
      _
    $region17: #{model_vision_forward.1} parent=1 // pred_fallthru
      _
    // Predicated region
    $region18: #{model_vision_forward.1} parent=1 // pred_check
      _
    $region19: #{model_vision_forward.1} parent=1 // pred_check_branch
      %34 = sbr.rel (0) target = $region21
    $region20: #{model_vision_forward.1} parent=1 // pred_region
      _
    $region21: #{model_vision_forward.1} parent=1 // pred_fallthru
      _
    // Predicated region
    $region22: #{model_vision_forward.1} parent=1 // pred_check
      _
    $region23: #{model_vision_forward.1} parent=1 // pred_check_branch
      %36 = sbr.rel (0) target = $region25
    $region24: #{model_vision_forward.1} parent=1 // pred_region
      _
    $region25: #{model_vision_forward.1} parent=1 // pred_fallthru
      _
    // Predicated region
    $region26: #{model_vision_forward.1} parent=1 // pred_check
      _
    $region27: #{model_vision_forward.1} parent=1 // pred_check_branch
      %38 = sbr.rel (0) target = $region29
    $region28: #{model_vision_forward.1} parent=1 // pred_region
      _
    $region29: #{model_vision_forward.1} parent=1 // pred_fallthru
      _
    // Predicated region
    $region30: #{model_vision_forward.1} parent=1 // pred_check
      _
    $region31: #{model_vision_forward.1} parent=1 // pred_check_branch
      %40 = sbr.rel (0) target = $region33
    $region32: #{model_vision_forward.1} parent=1 // pred_region
      _
    $region33: #{model_vision_forward.1} parent=1 // pred_fallthru
      _
    // Predicated region
    $region34: #{model_vision_forward.1} parent=1 // pred_check
      _
    $region35: #{model_vision_forward.1} parent=1 // pred_check_branch
      %42 = sbr.rel (0) target = $region37
    $region36: #{model_vision_forward.1} parent=1 // pred_region
      _
    $region37: #{model_vision_forward.1} parent=1 // pred_fallthru
      _
    // Predicated region
    $region38: #{model_vision_forward.1} parent=1 // pred_check
      _
    $region39: #{model_vision_forward.1} parent=1 // pred_check_branch
      %44 = sbr.rel (0) target = $region41
    $region40: #{model_vision_forward.1} parent=1 // pred_region
      %45 = dma.done [#allocation3], 32768
    $region41: #{model_vision_forward.1} parent=1 // pred_fallthru
      _
    %v47 = vld [vmem:[%s0] sm:$0xff]
    %v48 = vld [vmem:[%s0 + $0x8] sm:$0xff]
    %v49 = vld [vmem:[%s0 + $0x10] sm:$0xff]
    %v50 = vld [vmem:[%s0 + $0x18] sm:$0xff]
    %v51 = vld [vmem:[%s0 + $0x20] sm:$0xff]
    %v52 = vld [vmem:[%s0 + $0x28] sm:$0xff]
    %v53 = vld [vmem:[%s0 + $0x30] sm:$0xff]
    %v54 = vld [vmem:[%s0 + $0x38] sm:$0xff]
    %v55 = vpack.c.bf16 %v47, %v47
    %v56 = vpack.c.bf16 %v48, %v48
    %v57 = vpack.c.bf16 %v49, %v49
    %v58 = vpack.c.bf16 %v50, %v50
    %v59 = vpack.c.bf16 %v51, %v51
    %v60 = vpack.c.bf16 %v52, %v52
    %v61 = vpack.c.bf16 %v53, %v53
    %v62 = vpack.c.bf16 %v54, %v54
    %v63 = vld [vmem:[#allocation2] sm:$0xff]
    %v64 = vld [vmem:[#allocation2 + $0x8] sm:$0xff]
    %v65 = vld [vmem:[#allocation2 + $0x10] sm:$0xff]
    %v66 = vld [vmem:[#allocation2 + $0x18] sm:$0xff]
    %v67 = vld [vmem:[#allocation2 + $0x20] sm:$0xff]
    %v68 = vld [vmem:[#allocation2 + $0x28] sm:$0xff]
    %v69 = vld [vmem:[#allocation2 + $0x30] sm:$0xff]
    %v70 = vld [vmem:[#allocation2 + $0x38] sm:$0xff]
    %v71 = vld [vmem:[#allocation2 + $0x40] sm:$0xff]
    %v72 = vld [vmem:[#allocation2 + $0x48] sm:$0xff]
    %v73 = vld [vmem:[#allocation2 + $0x50] sm:$0xff]
    %v74 = vld [vmem:[#allocation2 + $0x58] sm:$0xff]
    %v75 = vld [vmem:[#allocation2 + $0x60] sm:$0xff]
    %v76 = vld [vmem:[#allocation2 + $0x68] sm:$0xff]
    %v77 = vld [vmem:[#allocation2 + $0x70] sm:$0xff]
    %v78 = vld [vmem:[#allocation2 + $0x78] sm:$0xff]
    %v79 = vld [vmem:[#allocation2 + $0x80] sm:$0xff]
    %v80 = vld [vmem:[#allocation2 + $0x88] sm:$0xff]
    %v81 = vld [vmem:[#allocation2 + $0x90] sm:$0xff]
    %v82 = vld [vmem:[#allocation2 + $0x98] sm:$0xff]
    %v83 = vld [vmem:[#allocation2 + $0xa0] sm:$0xff]
    %v84 = vld [vmem:[#allocation2 + $0xa8] sm:$0xff]
    %v85 = vld [vmem:[#allocation2 + $0xb0] sm:$0xff]
    %v86 = vld [vmem:[#allocation2 + $0xb8] sm:$0xff]
    %v87 = vld [vmem:[#allocation2 + $0xc0] sm:$0xff]
    %v88 = vld [vmem:[#allocation2 + $0xc8] sm:$0xff]
    %v89 = vld [vmem:[#allocation2 + $0xd0] sm:$0xff]
    %v90 = vld [vmem:[#allocation2 + $0xd8] sm:$0xff]
    %v91 = vld [vmem:[#allocation2 + $0xe0] sm:$0xff]
    %v92 = vld [vmem:[#allocation2 + $0xe8] sm:$0xff]
    %v93 = vld [vmem:[#allocation2 + $0xf0] sm:$0xff]
    %v94 = vld [vmem:[#allocation2 + $0xf8] sm:$0xff]
    %v95 = vld [vmem:[#allocation2 + $0x100] sm:$0xff]
    %v96 = vld [vmem:[#allocation2 + $0x108] sm:$0xff]
    %v97 = vld [vmem:[#allocation2 + $0x110] sm:$0xff]
    %v98 = vld [vmem:[#allocation2 + $0x118] sm:$0xff]
    %v99 = vld [vmem:[#allocation2 + $0x120] sm:$0xff]
    %v100 = vld [vmem:[#allocation2 + $0x128] sm:$0xff]
    %v101 = vld [vmem:[#allocation2 + $0x130] sm:$0xff]
    %v102 = vld [vmem:[#allocation2 + $0x138] sm:$0xff]
    %v103 = vld [vmem:[#allocation2 + $0x140] sm:$0xff]
    %v104 = vld [vmem:[#allocation2 + $0x148] sm:$0xff]
    %v105 = vld [vmem:[#allocation2 + $0x150] sm:$0xff]
    %v106 = vld [vmem:[#allocation2 + $0x158] sm:$0xff]
    %v107 = vld [vmem:[#allocation2 + $0x160] sm:$0xff]
    %v108 = vld [vmem:[#allocation2 + $0x168] sm:$0xff]
    %v109 = vld [vmem:[#allocation2 + $0x170] sm:$0xff]
    %v110 = vld [vmem:[#allocation2 + $0x178] sm:$0xff]
    %v111 = vld [vmem:[#allocation2 + $0x180] sm:$0xff]
    %v112 = vld [vmem:[#allocation2 + $0x188] sm:$0xff]
    %v113 = vld [vmem:[#allocation2 + $0x190] sm:$0xff]
    %v114 = vld [vmem:[#allocation2 + $0x198] sm:$0xff]
    %v115 = vld [vmem:[#allocation2 + $0x1a0] sm:$0xff]
    %v116 = vld [vmem:[#allocation2 + $0x1a8] sm:$0xff]
    %v117 = vld [vmem:[#allocation2 + $0x1b0] sm:$0xff]
    %v118 = vld [vmem:[#allocation2 + $0x1b8] sm:$0xff]
    %v119 = vld [vmem:[#allocation2 + $0x1c0] sm:$0xff]
    %v120 = vld [vmem:[#allocation2 + $0x1c8] sm:$0xff]
    %v121 = vld [vmem:[#allocation2 + $0x1d0] sm:$0xff]
    %v122 = vld [vmem:[#allocation2 + $0x1d8] sm:$0xff]
    %v123 = vld [vmem:[#allocation2 + $0x1e0] sm:$0xff]
    %v124 = vld [vmem:[#allocation2 + $0x1e8] sm:$0xff]
    %v125 = vld [vmem:[#allocation2 + $0x1f0] sm:$0xff]
    %v126 = vld [vmem:[#allocation2 + $0x1f8] sm:$0xff]
    %v127 = vld [vmem:[#allocation2 + $0x200] sm:$0xff]
    %v128 = vld [vmem:[#allocation2 + $0x208] sm:$0xff]
    %v129 = vld [vmem:[#allocation2 + $0x210] sm:$0xff]
    %v130 = vld [vmem:[#allocation2 + $0x218] sm:$0xff]
    %v131 = vld [vmem:[#allocation2 + $0x220] sm:$0xff]
    %v132 = vld [vmem:[#allocation2 + $0x228] sm:$0xff]
    %v133 = vld [vmem:[#allocation2 + $0x230] sm:$0xff]
    %v134 = vld [vmem:[#allocation2 + $0x238] sm:$0xff]
    %v135 = vld [vmem:[#allocation2 + $0x240] sm:$0xff]
    %v136 = vld [vmem:[#allocation2 + $0x248] sm:$0xff]
    %v137 = vld [vmem:[#allocation2 + $0x250] sm:$0xff]
    %v138 = vld [vmem:[#allocation2 + $0x258] sm:$0xff]
    %v139 = vld [vmem:[#allocation2 + $0x260] sm:$0xff]
    %v140 = vld [vmem:[#allocation2 + $0x268] sm:$0xff]
    %v141 = vld [vmem:[#allocation2 + $0x270] sm:$0xff]
    %v142 = vld [vmem:[#allocation2 + $0x278] sm:$0xff]
    %v143 = vld [vmem:[#allocation2 + $0x280] sm:$0xff]
    %v144 = vld [vmem:[#allocation2 + $0x288] sm:$0xff]
    %v145 = vld [vmem:[#allocation2 + $0x290] sm:$0xff]
    %v146 = vld [vmem:[#allocation2 + $0x298] sm:$0xff]
    %v147 = vld [vmem:[#allocation2 + $0x2a0] sm:$0xff]
    %v148 = vld [vmem:[#allocation2 + $0x2a8] sm:$0xff]
    %v149 = vld [vmem:[#allocation2 + $0x2b0] sm:$0xff]
    %v150 = vld [vmem:[#allocation2 + $0x2b8] sm:$0xff]
    %v151 = vld [vmem:[#allocation2 + $0x2c0] sm:$0xff]
    %v152 = vld [vmem:[#allocation2 + $0x2c8] sm:$0xff]
    %v153 = vld [vmem:[#allocation2 + $0x2d0] sm:$0xff]
    %v154 = vld [vmem:[#allocation2 + $0x2d8] sm:$0xff]
    %v155 = vld [vmem:[#allocation2 + $0x2e0] sm:$0xff]
    %v156 = vld [vmem:[#allocation2 + $0x2e8] sm:$0xff]
    %v157 = vld [vmem:[#allocation2 + $0x2f0] sm:$0xff]
    %v158 = vld [vmem:[#allocation2 + $0x2f8] sm:$0xff]
    %v159 = vld [vmem:[#allocation2 + $0x300] sm:$0xff]
    %v160 = vld [vmem:[#allocation2 + $0x308] sm:$0xff]
    %v161 = vld [vmem:[#allocation2 + $0x310] sm:$0xff]
    %v162 = vld [vmem:[#allocation2 + $0x318] sm:$0xff]
    %v163 = vld [vmem:[#allocation2 + $0x320] sm:$0xff]
    %v164 = vld [vmem:[#allocation2 + $0x328] sm:$0xff]
    %v165 = vld [vmem:[#allocation2 + $0x330] sm:$0xff]
    %v166 = vld [vmem:[#allocation2 + $0x338] sm:$0xff]
    %v167 = vld [vmem:[#allocation2 + $0x340] sm:$0xff]
    %v168 = vld [vmem:[#allocation2 + $0x348] sm:$0xff]
    %v169 = vld [vmem:[#allocation2 + $0x350] sm:$0xff]
    %v170 = vld [vmem:[#allocation2 + $0x358] sm:$0xff]
    %v171 = vld [vmem:[#allocation2 + $0x360] sm:$0xff]
    %v172 = vld [vmem:[#allocation2 + $0x368] sm:$0xff]
    %v173 = vld [vmem:[#allocation2 + $0x370] sm:$0xff]
    %v174 = vld [vmem:[#allocation2 + $0x378] sm:$0xff]
    %v175 = vld [vmem:[#allocation2 + $0x380] sm:$0xff]
    %v176 = vld [vmem:[#allocation2 + $0x388] sm:$0xff]
    %v177 = vld [vmem:[#allocation2 + $0x390] sm:$0xff]
    %v178 = vld [vmem:[#allocation2 + $0x398] sm:$0xff]
    %v179 = vld [vmem:[#allocation2 + $0x3a0] sm:$0xff]
    %v180 = vld [vmem:[#allocation2 + $0x3a8] sm:$0xff]
    %v181 = vld [vmem:[#allocation2 + $0x3b0] sm:$0xff]
    %v182 = vld [vmem:[#allocation2 + $0x3b8] sm:$0xff]
    %v183 = vld [vmem:[#allocation2 + $0x3c0] sm:$0xff]
    %v184 = vld [vmem:[#allocation2 + $0x3c8] sm:$0xff]
    %v185 = vld [vmem:[#allocation2 + $0x3d0] sm:$0xff]
    %v186 = vld [vmem:[#allocation2 + $0x3d8] sm:$0xff]
    %v187 = vld [vmem:[#allocation2 + $0x3e0] sm:$0xff]
    %v188 = vld [vmem:[#allocation2 + $0x3e8] sm:$0xff]
    %v189 = vld [vmem:[#allocation2 + $0x3f0] sm:$0xff]
    %v190 = vld [vmem:[#allocation2 + $0x3f8] sm:$0xff]
    %v191 = vld [vmem:[#allocation2 + $0x400] sm:$0xff]
    %v192 = vld [vmem:[#allocation2 + $0x408] sm:$0xff]
    %v193 = vld [vmem:[#allocation2 + $0x410] sm:$0xff]
    %v194 = vld [vmem:[#allocation2 + $0x418] sm:$0xff]
    %v195 = vld [vmem:[#allocation2 + $0x420] sm:$0xff]
    %v196 = vld [vmem:[#allocation2 + $0x428] sm:$0xff]
    %v197 = vld [vmem:[#allocation2 + $0x430] sm:$0xff]
    %v198 = vld [vmem:[#allocation2 + $0x438] sm:$0xff]
    %v199 = vld [vmem:[#allocation2 + $0x440] sm:$0xff]
    %v200 = vld [vmem:[#allocation2 + $0x448] sm:$0xff]
    %v201 = vld [vmem:[#allocation2 + $0x450] sm:$0xff]
    %v202 = vld [vmem:[#allocation2 + $0x458] sm:$0xff]
    %v203 = vld [vmem:[#allocation2 + $0x460] sm:$0xff]
    %v204 = vld [vmem:[#allocation2 + $0x468] sm:$0xff]
    %v205 = vld [vmem:[#allocation2 + $0x470] sm:$0xff]
    %v206 = vld [vmem:[#allocation2 + $0x478] sm:$0xff]
    %v207 = vld [vmem:[#allocation2 + $0x480] sm:$0xff]
    %v208 = vld [vmem:[#allocation2 + $0x488] sm:$0xff]
    %v209 = vld [vmem:[#allocation2 + $0x490] sm:$0xff]
    %v210 = vld [vmem:[#allocation2 + $0x498] sm:$0xff]
    %v211 = vld [vmem:[#allocation2 + $0x4a0] sm:$0xff]
    %v212 = vld [vmem:[#allocation2 + $0x4a8] sm:$0xff]
    %v213 = vld [vmem:[#allocation2 + $0x4b0] sm:$0xff]
    %v214 = vld [vmem:[#allocation2 + $0x4b8] sm:$0xff]
    %v215 = vld [vmem:[#allocation2 + $0x4c0] sm:$0xff]
    %v216 = vld [vmem:[#allocation2 + $0x4c8] sm:$0xff]
    %v217 = vld [vmem:[#allocation2 + $0x4d0] sm:$0xff]
    %v218 = vld [vmem:[#allocation2 + $0x4d8] sm:$0xff]
    %v219 = vld [vmem:[#allocation2 + $0x4e0] sm:$0xff]
    %v220 = vld [vmem:[#allocation2 + $0x4e8] sm:$0xff]
    %v221 = vld [vmem:[#allocation2 + $0x4f0] sm:$0xff]
    %v222 = vld [vmem:[#allocation2 + $0x4f8] sm:$0xff]
    %v223 = vld [vmem:[#allocation2 + $0x500] sm:$0xff]
    %v224 = vld [vmem:[#allocation2 + $0x508] sm:$0xff]
    %v225 = vld [vmem:[#allocation2 + $0x510] sm:$0xff]
    %v226 = vld [vmem:[#allocation2 + $0x518] sm:$0xff]
    %v227 = vld [vmem:[#allocation2 + $0x520] sm:$0xff]
    %v228 = vld [vmem:[#allocation2 + $0x528] sm:$0xff]
    %v229 = vld [vmem:[#allocation2 + $0x530] sm:$0xff]
    %v230 = vld [vmem:[#allocation2 + $0x538] sm:$0xff]
    %v231 = vld [vmem:[#allocation2 + $0x540] sm:$0xff]
    %v232 = vld [vmem:[#allocation2 + $0x548] sm:$0xff]
    %v233 = vld [vmem:[#allocation2 + $0x550] sm:$0xff]
    %v234 = vld [vmem:[#allocation2 + $0x558] sm:$0xff]
    %v235 = vld [vmem:[#allocation2 + $0x560] sm:$0xff]
    %v236 = vld [vmem:[#allocation2 + $0x568] sm:$0xff]
    %v237 = vld [vmem:[#allocation2 + $0x570] sm:$0xff]
    %v238 = vld [vmem:[#allocation2 + $0x578] sm:$0xff]
    %v239 = vld [vmem:[#allocation2 + $0x580] sm:$0xff]
    %v240 = vld [vmem:[#allocation2 + $0x588] sm:$0xff]
    %v241 = vld [vmem:[#allocation2 + $0x590] sm:$0xff]
    %v242 = vld [vmem:[#allocation2 + $0x598] sm:$0xff]
    %v243 = vld [vmem:[#allocation2 + $0x5a0] sm:$0xff]
    %v244 = vld [vmem:[#allocation2 + $0x5a8] sm:$0xff]
    %v245 = vld [vmem:[#allocation2 + $0x5b0] sm:$0xff]
    %v246 = vld [vmem:[#allocation2 + $0x5b8] sm:$0xff]
    %v247 = vld [vmem:[#allocation2 + $0x5c0] sm:$0xff]
    %v248 = vld [vmem:[#allocation2 + $0x5c8] sm:$0xff]
    %v249 = vld [vmem:[#allocation2 + $0x5d0] sm:$0xff]
    %v250 = vld [vmem:[#allocation2 + $0x5d8] sm:$0xff]
    %v251 = vld [vmem:[#allocation2 + $0x5e0] sm:$0xff]
    %v252 = vld [vmem:[#allocation2 + $0x5e8] sm:$0xff]
    %v253 = vld [vmem:[#allocation2 + $0x5f0] sm:$0xff]
    %v254 = vld [vmem:[#allocation2 + $0x5f8] sm:$0xff]
    %v255 = vld [vmem:[#allocation2 + $0x600] sm:$0xff]
    %v256 = vld [vmem:[#allocation2 + $0x608] sm:$0xff]
    %v257 = vld [vmem:[#allocation2 + $0x610] sm:$0xff]
    %v258 = vld [vmem:[#allocation2 + $0x618] sm:$0xff]
    %v259 = vld [vmem:[#allocation2 + $0x620] sm:$0xff]
    %v260 = vld [vmem:[#allocation2 + $0x628] sm:$0xff]
    %v261 = vld [vmem:[#allocation2 + $0x630] sm:$0xff]
    %v262 = vld [vmem:[#allocation2 + $0x638] sm:$0xff]
    %v263 = vld [vmem:[#allocation2 + $0x640] sm:$0xff]
    %v264 = vld [vmem:[#allocation2 + $0x648] sm:$0xff]
    %v265 = vld [vmem:[#allocation2 + $0x650] sm:$0xff]
    %v266 = vld [vmem:[#allocation2 + $0x658] sm:$0xff]
    %v267 = vld [vmem:[#allocation2 + $0x660] sm:$0xff]
    %v268 = vld [vmem:[#allocation2 + $0x668] sm:$0xff]
    %v269 = vld [vmem:[#allocation2 + $0x670] sm:$0xff]
    %v270 = vld [vmem:[#allocation2 + $0x678] sm:$0xff]
    %v271 = vld [vmem:[#allocation2 + $0x680] sm:$0xff]
    %v272 = vld [vmem:[#allocation2 + $0x688] sm:$0xff]
    %v273 = vld [vmem:[#allocation2 + $0x690] sm:$0xff]
    %v274 = vld [vmem:[#allocation2 + $0x698] sm:$0xff]
    %v275 = vld [vmem:[#allocation2 + $0x6a0] sm:$0xff]
    %v276 = vld [vmem:[#allocation2 + $0x6a8] sm:$0xff]
    %v277 = vld [vmem:[#allocation2 + $0x6b0] sm:$0xff]
    %v278 = vld [vmem:[#allocation2 + $0x6b8] sm:$0xff]
    %v279 = vld [vmem:[#allocation2 + $0x6c0] sm:$0xff]
    %v280 = vld [vmem:[#allocation2 + $0x6c8] sm:$0xff]
    %v281 = vld [vmem:[#allocation2 + $0x6d0] sm:$0xff]
    %v282 = vld [vmem:[#allocation2 + $0x6d8] sm:$0xff]
    %v283 = vld [vmem:[#allocation2 + $0x6e0] sm:$0xff]
    %v284 = vld [vmem:[#allocation2 + $0x6e8] sm:$0xff]
    %v285 = vld [vmem:[#allocation2 + $0x6f0] sm:$0xff]
    %v286 = vld [vmem:[#allocation2 + $0x6f8] sm:$0xff]
    %v287 = vld [vmem:[#allocation2 + $0x700] sm:$0xff]
    %v288 = vld [vmem:[#allocation2 + $0x708] sm:$0xff]
    %v289 = vld [vmem:[#allocation2 + $0x710] sm:$0xff]
    %v290 = vld [vmem:[#allocation2 + $0x718] sm:$0xff]
    %v291 = vld [vmem:[#allocation2 + $0x720] sm:$0xff]
    %v292 = vld [vmem:[#allocation2 + $0x728] sm:$0xff]
    %v293 = vld [vmem:[#allocation2 + $0x730] sm:$0xff]
    %v294 = vld [vmem:[#allocation2 + $0x738] sm:$0xff]
    %v295 = vld [vmem:[#allocation2 + $0x740] sm:$0xff]
    %v296 = vld [vmem:[#allocation2 + $0x748] sm:$0xff]
    %v297 = vld [vmem:[#allocation2 + $0x750] sm:$0xff]
    %v298 = vld [vmem:[#allocation2 + $0x758] sm:$0xff]
    %v299 = vld [vmem:[#allocation2 + $0x760] sm:$0xff]
    %v300 = vld [vmem:[#allocation2 + $0x768] sm:$0xff]
    %v301 = vld [vmem:[#allocation2 + $0x770] sm:$0xff]
    %v302 = vld [vmem:[#allocation2 + $0x778] sm:$0xff]
    %v303 = vld [vmem:[#allocation2 + $0x780] sm:$0xff]
    %v304 = vld [vmem:[#allocation2 + $0x788] sm:$0xff]
    %v305 = vld [vmem:[#allocation2 + $0x790] sm:$0xff]
    %v306 = vld [vmem:[#allocation2 + $0x798] sm:$0xff]
    %v307 = vld [vmem:[#allocation2 + $0x7a0] sm:$0xff]
    %v308 = vld [vmem:[#allocation2 + $0x7a8] sm:$0xff]
    %v309 = vld [vmem:[#allocation2 + $0x7b0] sm:$0xff]
    %v310 = vld [vmem:[#allocation2 + $0x7b8] sm:$0xff]
    %v311 = vld [vmem:[#allocation2 + $0x7c0] sm:$0xff]
    %v312 = vld [vmem:[#allocation2 + $0x7c8] sm:$0xff]
    %v313 = vld [vmem:[#allocation2 + $0x7d0] sm:$0xff]
    %v314 = vld [vmem:[#allocation2 + $0x7d8] sm:$0xff]
    %v315 = vld [vmem:[#allocation2 + $0x7e0] sm:$0xff]
    %v316 = vld [vmem:[#allocation2 + $0x7e8] sm:$0xff]
    %v317 = vld [vmem:[#allocation2 + $0x7f0] sm:$0xff]
    %v318 = vld [vmem:[#allocation2 + $0x7f8] sm:$0xff]
    %v319 = vld [vmem:[%s2] sm:$0xf]
    %v321 = vlaneseq
    %v322 = vshrl.u32 %v321, 7
    %v323 = vsub.s32 0, %v322
    %v324 = vrot.slane %v319, %v323
    %v325 = vlaneseq
    %v326 = vshrl.u32 %v325, 7
    %v327 = vsub.s32 1, %v326
    %v328 = vrot.slane %v319, %v327
    %v329 = vlaneseq
    %v330 = vshrl.u32 %v329, 7
    %v331 = vsub.s32 2, %v330
    %v332 = vrot.slane %v319, %v331
    %v333 = vlaneseq
    %v334 = vshrl.u32 %v333, 7
    %v335 = vsub.s32 3, %v334
    %v336 = vrot.slane %v319, %v335
    %v597 = vunpack.c.l.b16 %v63
    %v598 = vunpack.c.h.b16 %v63
    %v599 = vunpack.c.l.b16 %v64
    %v600 = vunpack.c.h.b16 %v64
    %v601 = vunpack.c.l.b16 %v65
    %v602 = vunpack.c.h.b16 %v65
    %v603 = vunpack.c.l.b16 %v66
    %v604 = vunpack.c.h.b16 %v66
    %v605 = vunpack.c.l.b16 %v67
    %v606 = vunpack.c.h.b16 %v67
    %v607 = vunpack.c.l.b16 %v68
    %v608 = vunpack.c.h.b16 %v68
    %v609 = vunpack.c.l.b16 %v69
    %v610 = vunpack.c.h.b16 %v69
    %v611 = vunpack.c.l.b16 %v70
    %v612 = vunpack.c.h.b16 %v70
    %v613 = vunpack.c.l.b16 %v71
    %v614 = vunpack.c.h.b16 %v71
    %v615 = vunpack.c.l.b16 %v72
    %v616 = vunpack.c.h.b16 %v72
    %v617 = vunpack.c.l.b16 %v73
    %v618 = vunpack.c.h.b16 %v73
    %v619 = vunpack.c.l.b16 %v74
    %v620 = vunpack.c.h.b16 %v74
    %v621 = vunpack.c.l.b16 %v75
    %v622 = vunpack.c.h.b16 %v75
    %v623 = vunpack.c.l.b16 %v76
    %v624 = vunpack.c.h.b16 %v76
    %v625 = vunpack.c.l.b16 %v77
    %v626 = vunpack.c.h.b16 %v77
    %v627 = vunpack.c.l.b16 %v78
    %v628 = vunpack.c.h.b16 %v78
    %v629 = vunpack.c.l.b16 %v79
    %v630 = vunpack.c.h.b16 %v79
    %v631 = vunpack.c.l.b16 %v80
    %v632 = vunpack.c.h.b16 %v80
    %v633 = vunpack.c.l.b16 %v81
    %v634 = vunpack.c.h.b16 %v81
    %v635 = vunpack.c.l.b16 %v82
    %v636 = vunpack.c.h.b16 %v82
    %v637 = vunpack.c.l.b16 %v83
    %v638 = vunpack.c.h.b16 %v83
    %v639 = vunpack.c.l.b16 %v84
    %v640 = vunpack.c.h.b16 %v84
    %v641 = vunpack.c.l.b16 %v85
    %v642 = vunpack.c.h.b16 %v85
    %v643 = vunpack.c.l.b16 %v86
    %v644 = vunpack.c.h.b16 %v86
    %v645 = vunpack.c.l.b16 %v87
    %v646 = vunpack.c.h.b16 %v87
    %v647 = vunpack.c.l.b16 %v88
    %v648 = vunpack.c.h.b16 %v88
    %v649 = vunpack.c.l.b16 %v89
    %v650 = vunpack.c.h.b16 %v89
    %v651 = vunpack.c.l.b16 %v90
    %v652 = vunpack.c.h.b16 %v90
    %v653 = vunpack.c.l.b16 %v91
    %v654 = vunpack.c.h.b16 %v91
    %v655 = vunpack.c.l.b16 %v92
    %v656 = vunpack.c.h.b16 %v92
    %v657 = vunpack.c.l.b16 %v93
    %v658 = vunpack.c.h.b16 %v93
    %v659 = vunpack.c.l.b16 %v94
    %v660 = vunpack.c.h.b16 %v94
    %v661 = vunpack.c.l.b16 %v95
    %v662 = vunpack.c.h.b16 %v95
    %v663 = vunpack.c.l.b16 %v96
    %v664 = vunpack.c.h.b16 %v96
    %v665 = vunpack.c.l.b16 %v97
    %v666 = vunpack.c.h.b16 %v97
    %v667 = vunpack.c.l.b16 %v98
    %v668 = vunpack.c.h.b16 %v98
    %v669 = vunpack.c.l.b16 %v99
    %v670 = vunpack.c.h.b16 %v99
    %v671 = vunpack.c.l.b16 %v100
    %v672 = vunpack.c.h.b16 %v100
    %v673 = vunpack.c.l.b16 %v101
    %v674 = vunpack.c.h.b16 %v101
    %v675 = vunpack.c.l.b16 %v102
    %v676 = vunpack.c.h.b16 %v102
    %v677 = vunpack.c.l.b16 %v103
    %v678 = vunpack.c.h.b16 %v103
    %v679 = vunpack.c.l.b16 %v104
    %v680 = vunpack.c.h.b16 %v104
    %v681 = vunpack.c.l.b16 %v105
    %v682 = vunpack.c.h.b16 %v105
    %v683 = vunpack.c.l.b16 %v106
    %v684 = vunpack.c.h.b16 %v106
    %v685 = vunpack.c.l.b16 %v107
    %v686 = vunpack.c.h.b16 %v107
    %v687 = vunpack.c.l.b16 %v108
    %v688 = vunpack.c.h.b16 %v108
    %v689 = vunpack.c.l.b16 %v109
    %v690 = vunpack.c.h.b16 %v109
    %v691 = vunpack.c.l.b16 %v110
    %v692 = vunpack.c.h.b16 %v110
    %v693 = vunpack.c.l.b16 %v111
    %v694 = vunpack.c.h.b16 %v111
    %v695 = vunpack.c.l.b16 %v112
    %v696 = vunpack.c.h.b16 %v112
    %v697 = vunpack.c.l.b16 %v113
    %v698 = vunpack.c.h.b16 %v113
    %v699 = vunpack.c.l.b16 %v114
    %v700 = vunpack.c.h.b16 %v114
    %v701 = vunpack.c.l.b16 %v115
    %v702 = vunpack.c.h.b16 %v115
    %v703 = vunpack.c.l.b16 %v116
    %v704 = vunpack.c.h.b16 %v116
    %v705 = vunpack.c.l.b16 %v117
    %v706 = vunpack.c.h.b16 %v117
    %v707 = vunpack.c.l.b16 %v118
    %v708 = vunpack.c.h.b16 %v118
    %v709 = vunpack.c.l.b16 %v119
    %v710 = vunpack.c.h.b16 %v119
    %v711 = vunpack.c.l.b16 %v120
    %v712 = vunpack.c.h.b16 %v120
    %v713 = vunpack.c.l.b16 %v121
    %v714 = vunpack.c.h.b16 %v121
    %v715 = vunpack.c.l.b16 %v122
    %v716 = vunpack.c.h.b16 %v122
    %v717 = vunpack.c.l.b16 %v123
    %v718 = vunpack.c.h.b16 %v123
    %v719 = vunpack.c.l.b16 %v124
    %v720 = vunpack.c.h.b16 %v124
    %v721 = vunpack.c.l.b16 %v125
    %v722 = vunpack.c.h.b16 %v125
    %v723 = vunpack.c.l.b16 %v126
    %v724 = vunpack.c.h.b16 %v126
    %v725 = vunpack.c.l.b16 %v127
    %v726 = vunpack.c.h.b16 %v127
    %v727 = vunpack.c.l.b16 %v128
    %v728 = vunpack.c.h.b16 %v128
    %v729 = vunpack.c.l.b16 %v129
    %v730 = vunpack.c.h.b16 %v129
    %v731 = vunpack.c.l.b16 %v130
    %v732 = vunpack.c.h.b16 %v130
    %v733 = vunpack.c.l.b16 %v131
    %v734 = vunpack.c.h.b16 %v131
    %v735 = vunpack.c.l.b16 %v132
    %v736 = vunpack.c.h.b16 %v132
    %v737 = vunpack.c.l.b16 %v133
    %v738 = vunpack.c.h.b16 %v133
    %v739 = vunpack.c.l.b16 %v134
    %v740 = vunpack.c.h.b16 %v134
    %v741 = vunpack.c.l.b16 %v135
    %v742 = vunpack.c.h.b16 %v135
    %v743 = vunpack.c.l.b16 %v136
    %v744 = vunpack.c.h.b16 %v136
    %v745 = vunpack.c.l.b16 %v137
    %v746 = vunpack.c.h.b16 %v137
    %v747 = vunpack.c.l.b16 %v138
    %v748 = vunpack.c.h.b16 %v138
    %v749 = vunpack.c.l.b16 %v139
    %v750 = vunpack.c.h.b16 %v139
    %v751 = vunpack.c.l.b16 %v140
    %v752 = vunpack.c.h.b16 %v140
    %v753 = vunpack.c.l.b16 %v141
    %v754 = vunpack.c.h.b16 %v141
    %v755 = vunpack.c.l.b16 %v142
    %v756 = vunpack.c.h.b16 %v142
    %v757 = vunpack.c.l.b16 %v143
    %v758 = vunpack.c.h.b16 %v143
    %v759 = vunpack.c.l.b16 %v144
    %v760 = vunpack.c.h.b16 %v144
    %v761 = vunpack.c.l.b16 %v145
    %v762 = vunpack.c.h.b16 %v145
    %v763 = vunpack.c.l.b16 %v146
    %v764 = vunpack.c.h.b16 %v146
    %v765 = vunpack.c.l.b16 %v147
    %v766 = vunpack.c.h.b16 %v147
    %v767 = vunpack.c.l.b16 %v148
    %v768 = vunpack.c.h.b16 %v148
    %v769 = vunpack.c.l.b16 %v149
    %v770 = vunpack.c.h.b16 %v149
    %v771 = vunpack.c.l.b16 %v150
    %v772 = vunpack.c.h.b16 %v150
    %v773 = vunpack.c.l.b16 %v151
    %v774 = vunpack.c.h.b16 %v151
    %v775 = vunpack.c.l.b16 %v152
    %v776 = vunpack.c.h.b16 %v152
    %v777 = vunpack.c.l.b16 %v153
    %v778 = vunpack.c.h.b16 %v153
    %v779 = vunpack.c.l.b16 %v154
    %v780 = vunpack.c.h.b16 %v154
    %v781 = vunpack.c.l.b16 %v155
    %v782 = vunpack.c.h.b16 %v155
    %v783 = vunpack.c.l.b16 %v156
    %v784 = vunpack.c.h.b16 %v156
    %v785 = vunpack.c.l.b16 %v157
    %v786 = vunpack.c.h.b16 %v157
    %v787 = vunpack.c.l.b16 %v158
    %v788 = vunpack.c.h.b16 %v158
    %v789 = vunpack.c.l.b16 %v159
    %v790 = vunpack.c.h.b16 %v159
    %v791 = vunpack.c.l.b16 %v160
    %v792 = vunpack.c.h.b16 %v160
    %v793 = vunpack.c.l.b16 %v161
    %v794 = vunpack.c.h.b16 %v161
    %v795 = vunpack.c.l.b16 %v162
    %v796 = vunpack.c.h.b16 %v162
    %v797 = vunpack.c.l.b16 %v163
    %v798 = vunpack.c.h.b16 %v163
    %v799 = vunpack.c.l.b16 %v164
    %v800 = vunpack.c.h.b16 %v164
    %v801 = vunpack.c.l.b16 %v165
    %v802 = vunpack.c.h.b16 %v165
    %v803 = vunpack.c.l.b16 %v166
    %v804 = vunpack.c.h.b16 %v166
    %v805 = vunpack.c.l.b16 %v167
    %v806 = vunpack.c.h.b16 %v167
    %v807 = vunpack.c.l.b16 %v168
    %v808 = vunpack.c.h.b16 %v168
    %v809 = vunpack.c.l.b16 %v169
    %v810 = vunpack.c.h.b16 %v169
    %v811 = vunpack.c.l.b16 %v170
    %v812 = vunpack.c.h.b16 %v170
    %v813 = vunpack.c.l.b16 %v171
    %v814 = vunpack.c.h.b16 %v171
    %v815 = vunpack.c.l.b16 %v172
    %v816 = vunpack.c.h.b16 %v172
    %v817 = vunpack.c.l.b16 %v173
    %v818 = vunpack.c.h.b16 %v173
    %v819 = vunpack.c.l.b16 %v174
    %v820 = vunpack.c.h.b16 %v174
    %v821 = vunpack.c.l.b16 %v175
    %v822 = vunpack.c.h.b16 %v175
    %v823 = vunpack.c.l.b16 %v176
    %v824 = vunpack.c.h.b16 %v176
    %v825 = vunpack.c.l.b16 %v177
    %v826 = vunpack.c.h.b16 %v177
    %v827 = vunpack.c.l.b16 %v178
    %v828 = vunpack.c.h.b16 %v178
    %v829 = vunpack.c.l.b16 %v179
    %v830 = vunpack.c.h.b16 %v179
    %v831 = vunpack.c.l.b16 %v180
    %v832 = vunpack.c.h.b16 %v180
    %v833 = vunpack.c.l.b16 %v181
    %v834 = vunpack.c.h.b16 %v181
    %v835 = vunpack.c.l.b16 %v182
    %v836 = vunpack.c.h.b16 %v182
    %v837 = vunpack.c.l.b16 %v183
    %v838 = vunpack.c.h.b16 %v183
    %v839 = vunpack.c.l.b16 %v184
    %v840 = vunpack.c.h.b16 %v184
    %v841 = vunpack.c.l.b16 %v185
    %v842 = vunpack.c.h.b16 %v185
    %v843 = vunpack.c.l.b16 %v186
    %v844 = vunpack.c.h.b16 %v186
    %v845 = vunpack.c.l.b16 %v187
    %v846 = vunpack.c.h.b16 %v187
    %v847 = vunpack.c.l.b16 %v188
    %v848 = vunpack.c.h.b16 %v188
    %v849 = vunpack.c.l.b16 %v189
    %v850 = vunpack.c.h.b16 %v189
    %v851 = vunpack.c.l.b16 %v190
    %v852 = vunpack.c.h.b16 %v190
    %v853 = vunpack.c.l.b16 %v191
    %v854 = vunpack.c.h.b16 %v191
    %v855 = vunpack.c.l.b16 %v192
    %v856 = vunpack.c.h.b16 %v192
    %v857 = vunpack.c.l.b16 %v193
    %v858 = vunpack.c.h.b16 %v193
    %v859 = vunpack.c.l.b16 %v194
    %v860 = vunpack.c.h.b16 %v194
    %v861 = vunpack.c.l.b16 %v195
    %v862 = vunpack.c.h.b16 %v195
    %v863 = vunpack.c.l.b16 %v196
    %v864 = vunpack.c.h.b16 %v196
    %v865 = vunpack.c.l.b16 %v197
    %v866 = vunpack.c.h.b16 %v197
    %v867 = vunpack.c.l.b16 %v198
    %v868 = vunpack.c.h.b16 %v198
    %v869 = vunpack.c.l.b16 %v199
    %v870 = vunpack.c.h.b16 %v199
    %v871 = vunpack.c.l.b16 %v200
    %v872 = vunpack.c.h.b16 %v200
    %v873 = vunpack.c.l.b16 %v201
    %v874 = vunpack.c.h.b16 %v201
    %v875 = vunpack.c.l.b16 %v202
    %v876 = vunpack.c.h.b16 %v202
    %v877 = vunpack.c.l.b16 %v203
    %v878 = vunpack.c.h.b16 %v203
    %v879 = vunpack.c.l.b16 %v204
    %v880 = vunpack.c.h.b16 %v204
    %v881 = vunpack.c.l.b16 %v205
    %v882 = vunpack.c.h.b16 %v205
    %v883 = vunpack.c.l.b16 %v206
    %v884 = vunpack.c.h.b16 %v206
    %v885 = vunpack.c.l.b16 %v207
    %v886 = vunpack.c.h.b16 %v207
    %v887 = vunpack.c.l.b16 %v208
    %v888 = vunpack.c.h.b16 %v208
    %v889 = vunpack.c.l.b16 %v209
    %v890 = vunpack.c.h.b16 %v209
    %v891 = vunpack.c.l.b16 %v210
    %v892 = vunpack.c.h.b16 %v210
    %v893 = vunpack.c.l.b16 %v211
    %v894 = vunpack.c.h.b16 %v211
    %v895 = vunpack.c.l.b16 %v212
    %v896 = vunpack.c.h.b16 %v212
    %v897 = vunpack.c.l.b16 %v213
    %v898 = vunpack.c.h.b16 %v213
    %v899 = vunpack.c.l.b16 %v214
    %v900 = vunpack.c.h.b16 %v214
    %v901 = vunpack.c.l.b16 %v215
    %v902 = vunpack.c.h.b16 %v215
    %v903 = vunpack.c.l.b16 %v216
    %v904 = vunpack.c.h.b16 %v216
    %v905 = vunpack.c.l.b16 %v217
    %v906 = vunpack.c.h.b16 %v217
    %v907 = vunpack.c.l.b16 %v218
    %v908 = vunpack.c.h.b16 %v218
    %v909 = vunpack.c.l.b16 %v219
    %v910 = vunpack.c.h.b16 %v219
    %v911 = vunpack.c.l.b16 %v220
    %v912 = vunpack.c.h.b16 %v220
    %v913 = vunpack.c.l.b16 %v221
    %v914 = vunpack.c.h.b16 %v221
    %v915 = vunpack.c.l.b16 %v222
    %v916 = vunpack.c.h.b16 %v222
    %v917 = vunpack.c.l.b16 %v223
    %v918 = vunpack.c.h.b16 %v223
    %v919 = vunpack.c.l.b16 %v224
    %v920 = vunpack.c.h.b16 %v224
    %v921 = vunpack.c.l.b16 %v225
    %v922 = vunpack.c.h.b16 %v225
    %v923 = vunpack.c.l.b16 %v226
    %v924 = vunpack.c.h.b16 %v226
    %v925 = vunpack.c.l.b16 %v227
    %v926 = vunpack.c.h.b16 %v227
    %v927 = vunpack.c.l.b16 %v228
    %v928 = vunpack.c.h.b16 %v228
    %v929 = vunpack.c.l.b16 %v229
    %v930 = vunpack.c.h.b16 %v229
    %v931 = vunpack.c.l.b16 %v230
    %v932 = vunpack.c.h.b16 %v230
    %v933 = vunpack.c.l.b16 %v231
    %v934 = vunpack.c.h.b16 %v231
    %v935 = vunpack.c.l.b16 %v232
    %v936 = vunpack.c.h.b16 %v232
    %v937 = vunpack.c.l.b16 %v233
    %v938 = vunpack.c.h.b16 %v233
    %v939 = vunpack.c.l.b16 %v234
    %v940 = vunpack.c.h.b16 %v234
    %v941 = vunpack.c.l.b16 %v235
    %v942 = vunpack.c.h.b16 %v235
    %v943 = vunpack.c.l.b16 %v236
    %v944 = vunpack.c.h.b16 %v236
    %v945 = vunpack.c.l.b16 %v237
    %v946 = vunpack.c.h.b16 %v237
    %v947 = vunpack.c.l.b16 %v238
    %v948 = vunpack.c.h.b16 %v238
    %v949 = vunpack.c.l.b16 %v239
    %v950 = vunpack.c.h.b16 %v239
    %v951 = vunpack.c.l.b16 %v240
    %v952 = vunpack.c.h.b16 %v240
    %v953 = vunpack.c.l.b16 %v241
    %v954 = vunpack.c.h.b16 %v241
    %v955 = vunpack.c.l.b16 %v242
    %v956 = vunpack.c.h.b16 %v242
    %v957 = vunpack.c.l.b16 %v243
    %v958 = vunpack.c.h.b16 %v243
    %v959 = vunpack.c.l.b16 %v244
    %v960 = vunpack.c.h.b16 %v244
    %v961 = vunpack.c.l.b16 %v245
    %v962 = vunpack.c.h.b16 %v245
    %v963 = vunpack.c.l.b16 %v246
    %v964 = vunpack.c.h.b16 %v246
    %v965 = vunpack.c.l.b16 %v247
    %v966 = vunpack.c.h.b16 %v247
    %v967 = vunpack.c.l.b16 %v248
    %v968 = vunpack.c.h.b16 %v248
    %v969 = vunpack.c.l.b16 %v249
    %v970 = vunpack.c.h.b16 %v249
    %v971 = vunpack.c.l.b16 %v250
    %v972 = vunpack.c.h.b16 %v250
    %v973 = vunpack.c.l.b16 %v251
    %v974 = vunpack.c.h.b16 %v251
    %v975 = vunpack.c.l.b16 %v252
    %v976 = vunpack.c.h.b16 %v252
    %v977 = vunpack.c.l.b16 %v253
    %v978 = vunpack.c.h.b16 %v253
    %v979 = vunpack.c.l.b16 %v254
    %v980 = vunpack.c.h.b16 %v254
    %v981 = vunpack.c.l.b16 %v255
    %v982 = vunpack.c.h.b16 %v255
    %v983 = vunpack.c.l.b16 %v256
    %v984 = vunpack.c.h.b16 %v256
    %v985 = vunpack.c.l.b16 %v257
    %v986 = vunpack.c.h.b16 %v257
    %v987 = vunpack.c.l.b16 %v258
    %v988 = vunpack.c.h.b16 %v258
    %v989 = vunpack.c.l.b16 %v259
    %v990 = vunpack.c.h.b16 %v259
    %v991 = vunpack.c.l.b16 %v260
    %v992 = vunpack.c.h.b16 %v260
    %v993 = vunpack.c.l.b16 %v261
    %v994 = vunpack.c.h.b16 %v261
    %v995 = vunpack.c.l.b16 %v262
    %v996 = vunpack.c.h.b16 %v262
    %v997 = vunpack.c.l.b16 %v263
    %v998 = vunpack.c.h.b16 %v263
    %v999 = vunpack.c.l.b16 %v264
    %v1000 = vunpack.c.h.b16 %v264
    %v1001 = vunpack.c.l.b16 %v265
    %v1002 = vunpack.c.h.b16 %v265
    %v1003 = vunpack.c.l.b16 %v266
    %v1004 = vunpack.c.h.b16 %v266
    %v1005 = vunpack.c.l.b16 %v267
    %v1006 = vunpack.c.h.b16 %v267
    %v1007 = vunpack.c.l.b16 %v268
    %v1008 = vunpack.c.h.b16 %v268
    %v1009 = vunpack.c.l.b16 %v269
    %v1010 = vunpack.c.h.b16 %v269
    %v1011 = vunpack.c.l.b16 %v270
    %v1012 = vunpack.c.h.b16 %v270
    %v1013 = vunpack.c.l.b16 %v271
    %v1014 = vunpack.c.h.b16 %v271
    %v1015 = vunpack.c.l.b16 %v272
    %v1016 = vunpack.c.h.b16 %v272
    %v1017 = vunpack.c.l.b16 %v273
    %v1018 = vunpack.c.h.b16 %v273
    %v1019 = vunpack.c.l.b16 %v274
    %v1020 = vunpack.c.h.b16 %v274
    %v1021 = vunpack.c.l.b16 %v275
    %v1022 = vunpack.c.h.b16 %v275
    %v1023 = vunpack.c.l.b16 %v276
    %v1024 = vunpack.c.h.b16 %v276
    %v1025 = vunpack.c.l.b16 %v277
    %v1026 = vunpack.c.h.b16 %v277
    %v1027 = vunpack.c.l.b16 %v278
    %v1028 = vunpack.c.h.b16 %v278
    %v1029 = vunpack.c.l.b16 %v279
    %v1030 = vunpack.c.h.b16 %v279
    %v1031 = vunpack.c.l.b16 %v280
    %v1032 = vunpack.c.h.b16 %v280
    %v1033 = vunpack.c.l.b16 %v281
    %v1034 = vunpack.c.h.b16 %v281
    %v1035 = vunpack.c.l.b16 %v282
    %v1036 = vunpack.c.h.b16 %v282
    %v1037 = vunpack.c.l.b16 %v283
    %v1038 = vunpack.c.h.b16 %v283
    %v1039 = vunpack.c.l.b16 %v284
    %v1040 = vunpack.c.h.b16 %v284
    %v1041 = vunpack.c.l.b16 %v285
    %v1042 = vunpack.c.h.b16 %v285
    %v1043 = vunpack.c.l.b16 %v286
    %v1044 = vunpack.c.h.b16 %v286
    %v1045 = vunpack.c.l.b16 %v287
    %v1046 = vunpack.c.h.b16 %v287
    %v1047 = vunpack.c.l.b16 %v288
    %v1048 = vunpack.c.h.b16 %v288
    %v1049 = vunpack.c.l.b16 %v289
    %v1050 = vunpack.c.h.b16 %v289
    %v1051 = vunpack.c.l.b16 %v290
    %v1052 = vunpack.c.h.b16 %v290
    %v1053 = vunpack.c.l.b16 %v291
    %v1054 = vunpack.c.h.b16 %v291
    %v1055 = vunpack.c.l.b16 %v292
    %v1056 = vunpack.c.h.b16 %v292
    %v1057 = vunpack.c.l.b16 %v293
    %v1058 = vunpack.c.h.b16 %v293
    %v1059 = vunpack.c.l.b16 %v294
    %v1060 = vunpack.c.h.b16 %v294
    %v1061 = vunpack.c.l.b16 %v295
    %v1062 = vunpack.c.h.b16 %v295
    %v1063 = vunpack.c.l.b16 %v296
    %v1064 = vunpack.c.h.b16 %v296
    %v1065 = vunpack.c.l.b16 %v297
    %v1066 = vunpack.c.h.b16 %v297
    %v1067 = vunpack.c.l.b16 %v298
    %v1068 = vunpack.c.h.b16 %v298
    %v1069 = vunpack.c.l.b16 %v299
    %v1070 = vunpack.c.h.b16 %v299
    %v1071 = vunpack.c.l.b16 %v300
    %v1072 = vunpack.c.h.b16 %v300
    %v1073 = vunpack.c.l.b16 %v301
    %v1074 = vunpack.c.h.b16 %v301
    %v1075 = vunpack.c.l.b16 %v302
    %v1076 = vunpack.c.h.b16 %v302
    %v1077 = vunpack.c.l.b16 %v303
    %v1078 = vunpack.c.h.b16 %v303
    %v1079 = vunpack.c.l.b16 %v304
    %v1080 = vunpack.c.h.b16 %v304
    %v1081 = vunpack.c.l.b16 %v305
    %v1082 = vunpack.c.h.b16 %v305
    %v1083 = vunpack.c.l.b16 %v306
    %v1084 = vunpack.c.h.b16 %v306
    %v1085 = vunpack.c.l.b16 %v307
    %v1086 = vunpack.c.h.b16 %v307
    %v1087 = vunpack.c.l.b16 %v308
    %v1088 = vunpack.c.h.b16 %v308
    %v1089 = vunpack.c.l.b16 %v309
    %v1090 = vunpack.c.h.b16 %v309
    %v1091 = vunpack.c.l.b16 %v310
    %v1092 = vunpack.c.h.b16 %v310
    %v1093 = vunpack.c.l.b16 %v311
    %v1094 = vunpack.c.h.b16 %v311
    %v1095 = vunpack.c.l.b16 %v312
    %v1096 = vunpack.c.h.b16 %v312
    %v1097 = vunpack.c.l.b16 %v313
    %v1098 = vunpack.c.h.b16 %v313
    %v1099 = vunpack.c.l.b16 %v314
    %v1100 = vunpack.c.h.b16 %v314
    %v1101 = vunpack.c.l.b16 %v315
    %v1102 = vunpack.c.h.b16 %v315
    %v1103 = vunpack.c.l.b16 %v316
    %v1104 = vunpack.c.h.b16 %v316
    %v1105 = vunpack.c.l.b16 %v317
    %v1106 = vunpack.c.h.b16 %v317
    %v1107 = vunpack.c.l.b16 %v318
    %v1108 = vunpack.c.h.b16 %v318
    %v1109 = vpack.c.b16 %v601, %v597
    %v1110 = vpack.c.b16 %v602, %v598
    %v1111 = vpack.c.b16 %v603, %v599
    %v1112 = vpack.c.b16 %v604, %v600
    %v1113 = vpack.c.b16 %v609, %v605
    %v1114 = vpack.c.b16 %v610, %v606
    %v1115 = vpack.c.b16 %v611, %v607
    %v1116 = vpack.c.b16 %v612, %v608
    %v1117 = vpack.c.b16 %v617, %v613
    %v1118 = vpack.c.b16 %v618, %v614
    %v1119 = vpack.c.b16 %v619, %v615
    %v1120 = vpack.c.b16 %v620, %v616
    %v1121 = vpack.c.b16 %v625, %v621
    %v1122 = vpack.c.b16 %v626, %v622
    %v1123 = vpack.c.b16 %v627, %v623
    %v1124 = vpack.c.b16 %v628, %v624
    %v1125 = vpack.c.b16 %v633, %v629
    %v1126 = vpack.c.b16 %v634, %v630
    %v1127 = vpack.c.b16 %v635, %v631
    %v1128 = vpack.c.b16 %v636, %v632
    %v1129 = vpack.c.b16 %v641, %v637
    %v1130 = vpack.c.b16 %v642, %v638
    %v1131 = vpack.c.b16 %v643, %v639
    %v1132 = vpack.c.b16 %v644, %v640
    %v1133 = vpack.c.b16 %v649, %v645
    %v1134 = vpack.c.b16 %v650, %v646
    %v1135 = vpack.c.b16 %v651, %v647
    %v1136 = vpack.c.b16 %v652, %v648
    %v1137 = vpack.c.b16 %v657, %v653
    %v1138 = vpack.c.b16 %v658, %v654
    %v1139 = vpack.c.b16 %v659, %v655
    %v1140 = vpack.c.b16 %v660, %v656
    %v1141 = vpack.c.b16 %v665, %v661
    %v1142 = vpack.c.b16 %v666, %v662
    %v1143 = vpack.c.b16 %v667, %v663
    %v1144 = vpack.c.b16 %v668, %v664
    %v1145 = vpack.c.b16 %v673, %v669
    %v1146 = vpack.c.b16 %v674, %v670
    %v1147 = vpack.c.b16 %v675, %v671
    %v1148 = vpack.c.b16 %v676, %v672
    %v1149 = vpack.c.b16 %v681, %v677
    %v1150 = vpack.c.b16 %v682, %v678
    %v1151 = vpack.c.b16 %v683, %v679
    %v1152 = vpack.c.b16 %v684, %v680
    %v1153 = vpack.c.b16 %v689, %v685
    %v1154 = vpack.c.b16 %v690, %v686
    %v1155 = vpack.c.b16 %v691, %v687
    %v1156 = vpack.c.b16 %v692, %v688
    %v1157 = vpack.c.b16 %v697, %v693
    %v1158 = vpack.c.b16 %v698, %v694
    %v1159 = vpack.c.b16 %v699, %v695
    %v1160 = vpack.c.b16 %v700, %v696
    %v1161 = vpack.c.b16 %v705, %v701
    %v1162 = vpack.c.b16 %v706, %v702
    %v1163 = vpack.c.b16 %v707, %v703
    %v1164 = vpack.c.b16 %v708, %v704
    %v1165 = vpack.c.b16 %v713, %v709
    %v1166 = vpack.c.b16 %v714, %v710
    %v1167 = vpack.c.b16 %v715, %v711
    %v1168 = vpack.c.b16 %v716, %v712
    %v1169 = vpack.c.b16 %v721, %v717
    %v1170 = vpack.c.b16 %v722, %v718
    %v1171 = vpack.c.b16 %v723, %v719
    %v1172 = vpack.c.b16 %v724, %v720
    %v1173 = vpack.c.b16 %v729, %v725
    %v1174 = vpack.c.b16 %v730, %v726
    %v1175 = vpack.c.b16 %v731, %v727
    %v1176 = vpack.c.b16 %v732, %v728
    %v1177 = vpack.c.b16 %v737, %v733
    %v1178 = vpack.c.b16 %v738, %v734
    %v1179 = vpack.c.b16 %v739, %v735
    %v1180 = vpack.c.b16 %v740, %v736
    %v1181 = vpack.c.b16 %v745, %v741
    %v1182 = vpack.c.b16 %v746, %v742
    %v1183 = vpack.c.b16 %v747, %v743
    %v1184 = vpack.c.b16 %v748, %v744
    %v1185 = vpack.c.b16 %v753, %v749
    %v1186 = vpack.c.b16 %v754, %v750
    %v1187 = vpack.c.b16 %v755, %v751
    %v1188 = vpack.c.b16 %v756, %v752
    %v1189 = vpack.c.b16 %v761, %v757
    %v1190 = vpack.c.b16 %v762, %v758
    %v1191 = vpack.c.b16 %v763, %v759
    %v1192 = vpack.c.b16 %v764, %v760
    %v1193 = vpack.c.b16 %v769, %v765
    %v1194 = vpack.c.b16 %v770, %v766
    %v1195 = vpack.c.b16 %v771, %v767
    %v1196 = vpack.c.b16 %v772, %v768
    %v1197 = vpack.c.b16 %v777, %v773
    %v1198 = vpack.c.b16 %v778, %v774
    %v1199 = vpack.c.b16 %v779, %v775
    %v1200 = vpack.c.b16 %v780, %v776
    %v1201 = vpack.c.b16 %v785, %v781
    %v1202 = vpack.c.b16 %v786, %v782
    %v1203 = vpack.c.b16 %v787, %v783
    %v1204 = vpack.c.b16 %v788, %v784
    %v1205 = vpack.c.b16 %v793, %v789
    %v1206 = vpack.c.b16 %v794, %v790
    %v1207 = vpack.c.b16 %v795, %v791
    %v1208 = vpack.c.b16 %v796, %v792
    %v1209 = vpack.c.b16 %v801, %v797
    %v1210 = vpack.c.b16 %v802, %v798
    %v1211 = vpack.c.b16 %v803, %v799
    %v1212 = vpack.c.b16 %v804, %v800
    %v1213 = vpack.c.b16 %v809, %v805
    %v1214 = vpack.c.b16 %v810, %v806
    %v1215 = vpack.c.b16 %v811, %v807
    %v1216 = vpack.c.b16 %v812, %v808
    %v1217 = vpack.c.b16 %v817, %v813
    %v1218 = vpack.c.b16 %v818, %v814
    %v1219 = vpack.c.b16 %v819, %v815
    %v1220 = vpack.c.b16 %v820, %v816
    %v1221 = vpack.c.b16 %v825, %v821
    %v1222 = vpack.c.b16 %v826, %v822
    %v1223 = vpack.c.b16 %v827, %v823
    %v1224 = vpack.c.b16 %v828, %v824
    %v1225 = vpack.c.b16 %v833, %v829
    %v1226 = vpack.c.b16 %v834, %v830
    %v1227 = vpack.c.b16 %v835, %v831
    %v1228 = vpack.c.b16 %v836, %v832
    %v1229 = vpack.c.b16 %v841, %v837
    %v1230 = vpack.c.b16 %v842, %v838
    %v1231 = vpack.c.b16 %v843, %v839
    %v1232 = vpack.c.b16 %v844, %v840
    %v1233 = vpack.c.b16 %v849, %v845
    %v1234 = vpack.c.b16 %v850, %v846
    %v1235 = vpack.c.b16 %v851, %v847
    %v1236 = vpack.c.b16 %v852, %v848
    %v1237 = vpack.c.b16 %v857, %v853
    %v1238 = vpack.c.b16 %v858, %v854
    %v1239 = vpack.c.b16 %v859, %v855
    %v1240 = vpack.c.b16 %v860, %v856
    %v1241 = vpack.c.b16 %v865, %v861
    %v1242 = vpack.c.b16 %v866, %v862
    %v1243 = vpack.c.b16 %v867, %v863
    %v1244 = vpack.c.b16 %v868, %v864
    %v1245 = vpack.c.b16 %v873, %v869
    %v1246 = vpack.c.b16 %v874, %v870
    %v1247 = vpack.c.b16 %v875, %v871
    %v1248 = vpack.c.b16 %v876, %v872
    %v1249 = vpack.c.b16 %v881, %v877
    %v1250 = vpack.c.b16 %v882, %v878
    %v1251 = vpack.c.b16 %v883, %v879
    %v1252 = vpack.c.b16 %v884, %v880
    %v1253 = vpack.c.b16 %v889, %v885
    %v1254 = vpack.c.b16 %v890, %v886
    %v1255 = vpack.c.b16 %v891, %v887
    %v1256 = vpack.c.b16 %v892, %v888
    %v1257 = vpack.c.b16 %v897, %v893
    %v1258 = vpack.c.b16 %v898, %v894
    %v1259 = vpack.c.b16 %v899, %v895
    %v1260 = vpack.c.b16 %v900, %v896
    %v1261 = vpack.c.b16 %v905, %v901
    %v1262 = vpack.c.b16 %v906, %v902
    %v1263 = vpack.c.b16 %v907, %v903
    %v1264 = vpack.c.b16 %v908, %v904
    %v1265 = vpack.c.b16 %v913, %v909
    %v1266 = vpack.c.b16 %v914, %v910
    %v1267 = vpack.c.b16 %v915, %v911
    %v1268 = vpack.c.b16 %v916, %v912
    %v1269 = vpack.c.b16 %v921, %v917
    %v1270 = vpack.c.b16 %v922, %v918
    %v1271 = vpack.c.b16 %v923, %v919
    %v1272 = vpack.c.b16 %v924, %v920
    %v1273 = vpack.c.b16 %v929, %v925
    %v1274 = vpack.c.b16 %v930, %v926
    %v1275 = vpack.c.b16 %v931, %v927
    %v1276 = vpack.c.b16 %v932, %v928
    %v1277 = vpack.c.b16 %v937, %v933
    %v1278 = vpack.c.b16 %v938, %v934
    %v1279 = vpack.c.b16 %v939, %v935
    %v1280 = vpack.c.b16 %v940, %v936
    %v1281 = vpack.c.b16 %v945, %v941
    %v1282 = vpack.c.b16 %v946, %v942
    %v1283 = vpack.c.b16 %v947, %v943
    %v1284 = vpack.c.b16 %v948, %v944
    %v1285 = vpack.c.b16 %v953, %v949
    %v1286 = vpack.c.b16 %v954, %v950
    %v1287 = vpack.c.b16 %v955, %v951
    %v1288 = vpack.c.b16 %v956, %v952
    %v1289 = vpack.c.b16 %v961, %v957
    %v1290 = vpack.c.b16 %v962, %v958
    %v1291 = vpack.c.b16 %v963, %v959
    %v1292 = vpack.c.b16 %v964, %v960
    %v1293 = vpack.c.b16 %v969, %v965
    %v1294 = vpack.c.b16 %v970, %v966
    %v1295 = vpack.c.b16 %v971, %v967
    %v1296 = vpack.c.b16 %v972, %v968
    %v1297 = vpack.c.b16 %v977, %v973
    %v1298 = vpack.c.b16 %v978, %v974
    %v1299 = vpack.c.b16 %v979, %v975
    %v1300 = vpack.c.b16 %v980, %v976
    %v1301 = vpack.c.b16 %v985, %v981
    %v1302 = vpack.c.b16 %v986, %v982
    %v1303 = vpack.c.b16 %v987, %v983
    %v1304 = vpack.c.b16 %v988, %v984
    %v1305 = vpack.c.b16 %v993, %v989
    %v1306 = vpack.c.b16 %v994, %v990
    %v1307 = vpack.c.b16 %v995, %v991
    %v1308 = vpack.c.b16 %v996, %v992
    %v1309 = vpack.c.b16 %v1001, %v997
    %v1310 = vpack.c.b16 %v1002, %v998
    %v1311 = vpack.c.b16 %v1003, %v999
    %v1312 = vpack.c.b16 %v1004, %v1000
    %v1313 = vpack.c.b16 %v1009, %v1005
    %v1314 = vpack.c.b16 %v1010, %v1006
    %v1315 = vpack.c.b16 %v1011, %v1007
    %v1316 = vpack.c.b16 %v1012, %v1008
    %v1317 = vpack.c.b16 %v1017, %v1013
    %v1318 = vpack.c.b16 %v1018, %v1014
    %v1319 = vpack.c.b16 %v1019, %v1015
    %v1320 = vpack.c.b16 %v1020, %v1016
    %v1321 = vpack.c.b16 %v1025, %v1021
    %v1322 = vpack.c.b16 %v1026, %v1022
    %v1323 = vpack.c.b16 %v1027, %v1023
    %v1324 = vpack.c.b16 %v1028, %v1024
    %v1325 = vpack.c.b16 %v1033, %v1029
    %v1326 = vpack.c.b16 %v1034, %v1030
    %v1327 = vpack.c.b16 %v1035, %v1031
    %v1328 = vpack.c.b16 %v1036, %v1032
    %v1329 = vpack.c.b16 %v1041, %v1037
    %v1330 = vpack.c.b16 %v1042, %v1038
    %v1331 = vpack.c.b16 %v1043, %v1039
    %v1332 = vpack.c.b16 %v1044, %v1040
    %v1333 = vpack.c.b16 %v1049, %v1045
    %v1334 = vpack.c.b16 %v1050, %v1046
    %v1335 = vpack.c.b16 %v1051, %v1047
    %v1336 = vpack.c.b16 %v1052, %v1048
    %v1337 = vpack.c.b16 %v1057, %v1053
    %v1338 = vpack.c.b16 %v1058, %v1054
    %v1339 = vpack.c.b16 %v1059, %v1055
    %v1340 = vpack.c.b16 %v1060, %v1056
    %v1341 = vpack.c.b16 %v1065, %v1061
    %v1342 = vpack.c.b16 %v1066, %v1062
    %v1343 = vpack.c.b16 %v1067, %v1063
    %v1344 = vpack.c.b16 %v1068, %v1064
    %v1345 = vpack.c.b16 %v1073, %v1069
    %v1346 = vpack.c.b16 %v1074, %v1070
    %v1347 = vpack.c.b16 %v1075, %v1071
    %v1348 = vpack.c.b16 %v1076, %v1072
    %v1349 = vpack.c.b16 %v1081, %v1077
    %v1350 = vpack.c.b16 %v1082, %v1078
    %v1351 = vpack.c.b16 %v1083, %v1079
    %v1352 = vpack.c.b16 %v1084, %v1080
    %v1353 = vpack.c.b16 %v1089, %v1085
    %v1354 = vpack.c.b16 %v1090, %v1086
    %v1355 = vpack.c.b16 %v1091, %v1087
    %v1356 = vpack.c.b16 %v1092, %v1088
    %v1357 = vpack.c.b16 %v1097, %v1093
    %v1358 = vpack.c.b16 %v1098, %v1094
    %v1359 = vpack.c.b16 %v1099, %v1095
    %v1360 = vpack.c.b16 %v1100, %v1096
    %v1361 = vpack.c.b16 %v1105, %v1101
    %v1362 = vpack.c.b16 %v1106, %v1102
    %v1363 = vpack.c.b16 %v1107, %v1103
    %v1364 = vpack.c.b16 %v1108, %v1104
    %1621 = vmatprep.subr.bf16.mxu0 %v1110
    %1622 = vmatpush1.bf16.msra.mxu0 %v1109
    %1623 = vmatprep.subr.bf16.mxu0 %v1114
    %1624 = vmatpush1.bf16.msra.mxu0 %v1113
    %1625 = vmatprep.subr.bf16.mxu0 %v1118
    %1626 = vmatpush1.bf16.msra.mxu0 %v1117
    %1627 = vmatprep.subr.bf16.mxu0 %v1122
    %1628 = vmatpush1.bf16.msra.mxu0 %v1121
    %1629 = vmatprep.subr.bf16.mxu0 %v1126
    %1630 = vmatpush1.bf16.msra.mxu0 %v1125
    %1631 = vmatprep.subr.bf16.mxu0 %v1130
    %1632 = vmatpush1.bf16.msra.mxu0 %v1129
    %1633 = vmatprep.subr.bf16.mxu0 %v1134
    %1634 = vmatpush1.bf16.msra.mxu0 %v1133
    %1635 = vmatprep.subr.bf16.mxu0 %v1138
    %1636 = vmatpush1.bf16.msra.mxu0 %v1137
    %1637 = vmatprep.subr.bf16.mxu0 %v1142
    %1638 = vmatpush1.bf16.msra.mxu0 %v1141
    %1639 = vmatprep.subr.bf16.mxu0 %v1146
    %1640 = vmatpush1.bf16.msra.mxu0 %v1145
    %1641 = vmatprep.subr.bf16.mxu0 %v1150
    %1642 = vmatpush1.bf16.msra.mxu0 %v1149
    %1643 = vmatprep.subr.bf16.mxu0 %v1154
    %1644 = vmatpush1.bf16.msra.mxu0 %v1153
    %1645 = vmatprep.subr.bf16.mxu0 %v1158
    %1646 = vmatpush1.bf16.msra.mxu0 %v1157
    %1647 = vmatprep.subr.bf16.mxu0 %v1162
    %1648 = vmatpush1.bf16.msra.mxu0 %v1161
    %1649 = vmatprep.subr.bf16.mxu0 %v1166
    %1650 = vmatpush1.bf16.msra.mxu0 %v1165
    %1651 = vmatprep.subr.bf16.mxu0 %v1170
    %1652 = vmatpush1.bf16.msra.mxu0 %v1169
    %1653 = vmatprep.mubr.bf16.mxu0 %v56
    %1654 = vmatmul.mubr.bf16.gmra.mrb[0].mxu0 %v55
    %v1655 = vpop.f32.mrb[0].mxu0
    %v1656 = vadd.f32 %v324, %v1655
    %v1657 = vpop.f32.mrb[0].mxu0
    %v1658 = vadd.f32 %v328, %v1657
    %v1659 = vpop.f32.mrb[0].mxu0
    %v1660 = vpop.f32.mrb[0].mxu0
    %1661 = vdwg.mxu0
    %1662 = vmatprep.subr.bf16.mxu0 %v1174
    %1663 = vmatpush1.bf16.msra.mxu0 %v1173
    %1664 = vmatprep.subr.bf16.mxu0 %v1178
    %1665 = vmatpush1.bf16.msra.mxu0 %v1177
    %1666 = vmatprep.subr.bf16.mxu0 %v1182
    %1667 = vmatpush1.bf16.msra.mxu0 %v1181
    %1668 = vmatprep.subr.bf16.mxu0 %v1186
    %1669 = vmatpush1.bf16.msra.mxu0 %v1185
    %1670 = vmatprep.subr.bf16.mxu0 %v1190
    %1671 = vmatpush1.bf16.msra.mxu0 %v1189
    %1672 = vmatprep.subr.bf16.mxu0 %v1194
    %1673 = vmatpush1.bf16.msra.mxu0 %v1193
    %1674 = vmatprep.subr.bf16.mxu0 %v1198
    %1675 = vmatpush1.bf16.msra.mxu0 %v1197
    %1676 = vmatprep.subr.bf16.mxu0 %v1202
    %1677 = vmatpush1.bf16.msra.mxu0 %v1201
    %1678 = vmatprep.subr.bf16.mxu0 %v1206
    %1679 = vmatpush1.bf16.msra.mxu0 %v1205
    %1680 = vmatprep.subr.bf16.mxu0 %v1210
    %1681 = vmatpush1.bf16.msra.mxu0 %v1209
    %1682 = vmatprep.subr.bf16.mxu0 %v1214
    %1683 = vmatpush1.bf16.msra.mxu0 %v1213
    %1684 = vmatprep.subr.bf16.mxu0 %v1218
    %1685 = vmatpush1.bf16.msra.mxu0 %v1217
    %1686 = vmatprep.subr.bf16.mxu0 %v1222
    %1687 = vmatpush1.bf16.msra.mxu0 %v1221
    %1688 = vmatprep.subr.bf16.mxu0 %v1226
    %1689 = vmatpush1.bf16.msra.mxu0 %v1225
    %1690 = vmatprep.subr.bf16.mxu0 %v1230
    %1691 = vmatpush1.bf16.msra.mxu0 %v1229
    %1692 = vmatprep.subr.bf16.mxu0 %v1234
    %1693 = vmatpush1.bf16.msra.mxu0 %v1233
    %1694 = vmatprep.mubr.bf16.mxu0 %v58
    %1695 = vmatmul.mubr.bf16.gmra.mrb[0].mxu0 %v57
    %v1696 = vpop.f32.mrb[0].mxu0
    %v1697 = vadd.f32 %v1656, %v1696
    %v1698 = vpop.f32.mrb[0].mxu0
    %v1699 = vadd.f32 %v1658, %v1698
    %v1700 = vpop.f32.mrb[0].mxu0
    %v1701 = vpop.f32.mrb[0].mxu0
    %1702 = vdwg.mxu0
    %1703 = vmatprep.subr.bf16.mxu0 %v1238
    %1704 = vmatpush1.bf16.msra.mxu0 %v1237
    %1705 = vmatprep.subr.bf16.mxu0 %v1242
    %1706 = vmatpush1.bf16.msra.mxu0 %v1241
    %1707 = vmatprep.subr.bf16.mxu0 %v1246
    %1708 = vmatpush1.bf16.msra.mxu0 %v1245
    %1709 = vmatprep.subr.bf16.mxu0 %v1250
    %1710 = vmatpush1.bf16.msra.mxu0 %v1249
    %1711 = vmatprep.subr.bf16.mxu0 %v1254
    %1712 = vmatpush1.bf16.msra.mxu0 %v1253
    %1713 = vmatprep.subr.bf16.mxu0 %v1258
    %1714 = vmatpush1.bf16.msra.mxu0 %v1257
    %1715 = vmatprep.subr.bf16.mxu0 %v1262
    %1716 = vmatpush1.bf16.msra.mxu0 %v1261
    %1717 = vmatprep.subr.bf16.mxu0 %v1266
    %1718 = vmatpush1.bf16.msra.mxu0 %v1265
    %1719 = vmatprep.subr.bf16.mxu0 %v1270
    %1720 = vmatpush1.bf16.msra.mxu0 %v1269
    %1721 = vmatprep.subr.bf16.mxu0 %v1274
    %1722 = vmatpush1.bf16.msra.mxu0 %v1273
    %1723 = vmatprep.subr.bf16.mxu0 %v1278
    %1724 = vmatpush1.bf16.msra.mxu0 %v1277
    %1725 = vmatprep.subr.bf16.mxu0 %v1282
    %1726 = vmatpush1.bf16.msra.mxu0 %v1281
    %1727 = vmatprep.subr.bf16.mxu0 %v1286
    %1728 = vmatpush1.bf16.msra.mxu0 %v1285
    %1729 = vmatprep.subr.bf16.mxu0 %v1290
    %1730 = vmatpush1.bf16.msra.mxu0 %v1289
    %1731 = vmatprep.subr.bf16.mxu0 %v1294
    %1732 = vmatpush1.bf16.msra.mxu0 %v1293
    %1733 = vmatprep.subr.bf16.mxu0 %v1298
    %1734 = vmatpush1.bf16.msra.mxu0 %v1297
    %1735 = vmatprep.mubr.bf16.mxu0 %v60
    %1736 = vmatmul.mubr.bf16.gmra.mrb[0].mxu0 %v59
    %v1737 = vpop.f32.mrb[0].mxu0
    %v1738 = vadd.f32 %v1697, %v1737
    %v1739 = vpop.f32.mrb[0].mxu0
    %v1740 = vadd.f32 %v1699, %v1739
    %v1741 = vpop.f32.mrb[0].mxu0
    %v1742 = vpop.f32.mrb[0].mxu0
    %1743 = vdwg.mxu0
    %1744 = vmatprep.subr.bf16.mxu0 %v1302
    %1745 = vmatpush1.bf16.msra.mxu0 %v1301
    %1746 = vmatprep.subr.bf16.mxu0 %v1306
    %1747 = vmatpush1.bf16.msra.mxu0 %v1305
    %1748 = vmatprep.subr.bf16.mxu0 %v1310
    %1749 = vmatpush1.bf16.msra.mxu0 %v1309
    %1750 = vmatprep.subr.bf16.mxu0 %v1314
    %1751 = vmatpush1.bf16.msra.mxu0 %v1313
    %1752 = vmatprep.subr.bf16.mxu0 %v1318
    %1753 = vmatpush1.bf16.msra.mxu0 %v1317
    %1754 = vmatprep.subr.bf16.mxu0 %v1322
    %1755 = vmatpush1.bf16.msra.mxu0 %v1321
    %1756 = vmatprep.subr.bf16.mxu0 %v1326
    %1757 = vmatpush1.bf16.msra.mxu0 %v1325
    %1758 = vmatprep.subr.bf16.mxu0 %v1330
    %1759 = vmatpush1.bf16.msra.mxu0 %v1329
    %1760 = vmatprep.subr.bf16.mxu0 %v1334
    %1761 = vmatpush1.bf16.msra.mxu0 %v1333
    %1762 = vmatprep.subr.bf16.mxu0 %v1338
    %1763 = vmatpush1.bf16.msra.mxu0 %v1337
    %1764 = vmatprep.subr.bf16.mxu0 %v1342
    %1765 = vmatpush1.bf16.msra.mxu0 %v1341
    %1766 = vmatprep.subr.bf16.mxu0 %v1346
    %1767 = vmatpush1.bf16.msra.mxu0 %v1345
    %1768 = vmatprep.subr.bf16.mxu0 %v1350
    %1769 = vmatpush1.bf16.msra.mxu0 %v1349
    %1770 = vmatprep.subr.bf16.mxu0 %v1354
    %1771 = vmatpush1.bf16.msra.mxu0 %v1353
    %1772 = vmatprep.subr.bf16.mxu0 %v1358
    %1773 = vmatpush1.bf16.msra.mxu0 %v1357
    %1774 = vmatprep.subr.bf16.mxu0 %v1362
    %1775 = vmatpush1.bf16.msra.mxu0 %v1361
    %1776 = vmatprep.mubr.bf16.mxu0 %v62
    %1777 = vmatmul.mubr.bf16.gmra.mrb[0].mxu0 %v61
    %v1778 = vpop.f32.mrb[0].mxu0
    %v1779 = vadd.f32 %v1738, %v1778
    %v1780 = vpop.f32.mrb[0].mxu0
    %v1781 = vadd.f32 %v1740, %v1780
    %v1782 = vpop.f32.mrb[0].mxu0
    %v1783 = vpop.f32.mrb[0].mxu0
    %1784 = vdwg.mxu0
    %1785 = vmatprep.subr.bf16.mxu0 %v1112
    %1786 = vmatpush1.bf16.msra.mxu0 %v1111
    %1787 = vmatprep.subr.bf16.mxu0 %v1116
    %1788 = vmatpush1.bf16.msra.mxu0 %v1115
    %1789 = vmatprep.subr.bf16.mxu0 %v1120
    %1790 = vmatpush1.bf16.msra.mxu0 %v1119
    %1791 = vmatprep.subr.bf16.mxu0 %v1124
    %1792 = vmatpush1.bf16.msra.mxu0 %v1123
    %1793 = vmatprep.subr.bf16.mxu0 %v1128
    %1794 = vmatpush1.bf16.msra.mxu0 %v1127
    %1795 = vmatprep.subr.bf16.mxu0 %v1132
    %1796 = vmatpush1.bf16.msra.mxu0 %v1131
    %1797 = vmatprep.subr.bf16.mxu0 %v1136
    %1798 = vmatpush1.bf16.msra.mxu0 %v1135
    %1799 = vmatprep.subr.bf16.mxu0 %v1140
    %1800 = vmatpush1.bf16.msra.mxu0 %v1139
    %1801 = vmatprep.subr.bf16.mxu0 %v1144
    %1802 = vmatpush1.bf16.msra.mxu0 %v1143
    %1803 = vmatprep.subr.bf16.mxu0 %v1148
    %1804 = vmatpush1.bf16.msra.mxu0 %v1147
    %1805 = vmatprep.subr.bf16.mxu0 %v1152
    %1806 = vmatpush1.bf16.msra.mxu0 %v1151
    %1807 = vmatprep.subr.bf16.mxu0 %v1156
    %1808 = vmatpush1.bf16.msra.mxu0 %v1155
    %1809 = vmatprep.subr.bf16.mxu0 %v1160
    %1810 = vmatpush1.bf16.msra.mxu0 %v1159
    %1811 = vmatprep.subr.bf16.mxu0 %v1164
    %1812 = vmatpush1.bf16.msra.mxu0 %v1163
    %1813 = vmatprep.subr.bf16.mxu0 %v1168
    %1814 = vmatpush1.bf16.msra.mxu0 %v1167
    %1815 = vmatprep.subr.bf16.mxu0 %v1172
    %1816 = vmatpush1.bf16.msra.mxu0 %v1171
    %1817 = vmatprep.mubr.bf16.mxu0 %v56
    %1818 = vmatmul.mubr.bf16.gmra.mrb[0].mxu0 %v55
    %v1819 = vpop.f32.mrb[0].mxu0
    %v1820 = vadd.f32 %v332, %v1819
    %v1821 = vpop.f32.mrb[0].mxu0
    %v1822 = vadd.f32 %v336, %v1821
    %v1823 = vpop.f32.mrb[0].mxu0
    %v1824 = vpop.f32.mrb[0].mxu0
    %1825 = vdwg.mxu0
    %1826 = vmatprep.subr.bf16.mxu0 %v1176
    %1827 = vmatpush1.bf16.msra.mxu0 %v1175
    %1828 = vmatprep.subr.bf16.mxu0 %v1180
    %1829 = vmatpush1.bf16.msra.mxu0 %v1179
    %1830 = vmatprep.subr.bf16.mxu0 %v1184
    %1831 = vmatpush1.bf16.msra.mxu0 %v1183
    %1832 = vmatprep.subr.bf16.mxu0 %v1188
    %1833 = vmatpush1.bf16.msra.mxu0 %v1187
    %1834 = vmatprep.subr.bf16.mxu0 %v1192
    %1835 = vmatpush1.bf16.msra.mxu0 %v1191
    %1836 = vmatprep.subr.bf16.mxu0 %v1196
    %1837 = vmatpush1.bf16.msra.mxu0 %v1195
    %1838 = vmatprep.subr.bf16.mxu0 %v1200
    %1839 = vmatpush1.bf16.msra.mxu0 %v1199
    %1840 = vmatprep.subr.bf16.mxu0 %v1204
    %1841 = vmatpush1.bf16.msra.mxu0 %v1203
    %1842 = vmatprep.subr.bf16.mxu0 %v1208
    %1843 = vmatpush1.bf16.msra.mxu0 %v1207
    %1844 = vmatprep.subr.bf16.mxu0 %v1212
    %1845 = vmatpush1.bf16.msra.mxu0 %v1211
    %1846 = vmatprep.subr.bf16.mxu0 %v1216
    %1847 = vmatpush1.bf16.msra.mxu0 %v1215
    %1848 = vmatprep.subr.bf16.mxu0 %v1220
    %1849 = vmatpush1.bf16.msra.mxu0 %v1219
    %1850 = vmatprep.subr.bf16.mxu0 %v1224
    %1851 = vmatpush1.bf16.msra.mxu0 %v1223
    %1852 = vmatprep.subr.bf16.mxu0 %v1228
    %1853 = vmatpush1.bf16.msra.mxu0 %v1227
    %1854 = vmatprep.subr.bf16.mxu0 %v1232
    %1855 = vmatpush1.bf16.msra.mxu0 %v1231
    %1856 = vmatprep.subr.bf16.mxu0 %v1236
    %1857 = vmatpush1.bf16.msra.mxu0 %v1235
    %1858 = vmatprep.mubr.bf16.mxu0 %v58
    %1859 = vmatmul.mubr.bf16.gmra.mrb[0].mxu0 %v57
    %v1860 = vpop.f32.mrb[0].mxu0
    %v1861 = vadd.f32 %v1820, %v1860
    %v1862 = vpop.f32.mrb[0].mxu0
    %v1863 = vadd.f32 %v1822, %v1862
    %v1864 = vpop.f32.mrb[0].mxu0
    %v1865 = vpop.f32.mrb[0].mxu0
    %1866 = vdwg.mxu0
    %1867 = vmatprep.subr.bf16.mxu0 %v1240
    %1868 = vmatpush1.bf16.msra.mxu0 %v1239
    %1869 = vmatprep.subr.bf16.mxu0 %v1244
    %1870 = vmatpush1.bf16.msra.mxu0 %v1243
    %1871 = vmatprep.subr.bf16.mxu0 %v1248
    %1872 = vmatpush1.bf16.msra.mxu0 %v1247
    %1873 = vmatprep.subr.bf16.mxu0 %v1252
    %1874 = vmatpush1.bf16.msra.mxu0 %v1251
    %1875 = vmatprep.subr.bf16.mxu0 %v1256
    %1876 = vmatpush1.bf16.msra.mxu0 %v1255
    %1877 = vmatprep.subr.bf16.mxu0 %v1260
    %1878 = vmatpush1.bf16.msra.mxu0 %v1259
    %1879 = vmatprep.subr.bf16.mxu0 %v1264
    %1880 = vmatpush1.bf16.msra.mxu0 %v1263
    %1881 = vmatprep.subr.bf16.mxu0 %v1268
    %1882 = vmatpush1.bf16.msra.mxu0 %v1267
    %1883 = vmatprep.subr.bf16.mxu0 %v1272
    %1884 = vmatpush1.bf16.msra.mxu0 %v1271
    %1885 = vmatprep.subr.bf16.mxu0 %v1276
    %1886 = vmatpush1.bf16.msra.mxu0 %v1275
    %1887 = vmatprep.subr.bf16.mxu0 %v1280
    %1888 = vmatpush1.bf16.msra.mxu0 %v1279
    %1889 = vmatprep.subr.bf16.mxu0 %v1284
    %1890 = vmatpush1.bf16.msra.mxu0 %v1283
    %1891 = vmatprep.subr.bf16.mxu0 %v1288
    %1892 = vmatpush1.bf16.msra.mxu0 %v1287
    %1893 = vmatprep.subr.bf16.mxu0 %v1292
    %1894 = vmatpush1.bf16.msra.mxu0 %v1291
    %1895 = vmatprep.subr.bf16.mxu0 %v1296
    %1896 = vmatpush1.bf16.msra.mxu0 %v1295
    %1897 = vmatprep.subr.bf16.mxu0 %v1300
    %1898 = vmatpush1.bf16.msra.mxu0 %v1299
    %1899 = vmatprep.mubr.bf16.mxu0 %v60
    %1900 = vmatmul.mubr.bf16.gmra.mrb[0].mxu0 %v59
    %v1901 = vpop.f32.mrb[0].mxu0
    %v1902 = vadd.f32 %v1861, %v1901
    %v1903 = vpop.f32.mrb[0].mxu0
    %v1904 = vadd.f32 %v1863, %v1903
    %v1905 = vpop.f32.mrb[0].mxu0
    %v1906 = vpop.f32.mrb[0].mxu0
    %1907 = vdwg.mxu0
    %1908 = vmatprep.subr.bf16.mxu0 %v1304
    %1909 = vmatpush1.bf16.msra.mxu0 %v1303
    %1910 = vmatprep.subr.bf16.mxu0 %v1308
    %1911 = vmatpush1.bf16.msra.mxu0 %v1307
    %1912 = vmatprep.subr.bf16.mxu0 %v1312
    %1913 = vmatpush1.bf16.msra.mxu0 %v1311
    %1914 = vmatprep.subr.bf16.mxu0 %v1316
    %1915 = vmatpush1.bf16.msra.mxu0 %v1315
    %1916 = vmatprep.subr.bf16.mxu0 %v1320
    %1917 = vmatpush1.bf16.msra.mxu0 %v1319
    %1918 = vmatprep.subr.bf16.mxu0 %v1324
    %1919 = vmatpush1.bf16.msra.mxu0 %v1323
    %1920 = vmatprep.subr.bf16.mxu0 %v1328
    %1921 = vmatpush1.bf16.msra.mxu0 %v1327
    %1922 = vmatprep.subr.bf16.mxu0 %v1332
    %1923 = vmatpush1.bf16.msra.mxu0 %v1331
    %1924 = vmatprep.subr.bf16.mxu0 %v1336
    %1925 = vmatpush1.bf16.msra.mxu0 %v1335
    %1926 = vmatprep.subr.bf16.mxu0 %v1340
    %1927 = vmatpush1.bf16.msra.mxu0 %v1339
    %1928 = vmatprep.subr.bf16.mxu0 %v1344
    %1929 = vmatpush1.bf16.msra.mxu0 %v1343
    %1930 = vmatprep.subr.bf16.mxu0 %v1348
    %1931 = vmatpush1.bf16.msra.mxu0 %v1347
    %1932 = vmatprep.subr.bf16.mxu0 %v1352
    %1933 = vmatpush1.bf16.msra.mxu0 %v1351
    %1934 = vmatprep.subr.bf16.mxu0 %v1356
    %1935 = vmatpush1.bf16.msra.mxu0 %v1355
    %1936 = vmatprep.subr.bf16.mxu0 %v1360
    %1937 = vmatpush1.bf16.msra.mxu0 %v1359
    %1938 = vmatprep.subr.bf16.mxu0 %v1364
    %1939 = vmatpush1.bf16.msra.mxu0 %v1363
    %1940 = vmatprep.mubr.bf16.mxu0 %v62
    %1941 = vmatmul.mubr.bf16.gmra.mrb[0].mxu0 %v61
    %v1942 = vpop.f32.mrb[0].mxu0
    %v1943 = vadd.f32 %v1902, %v1942
    %v1944 = vpop.f32.mrb[0].mxu0
    %v1945 = vadd.f32 %v1904, %v1944
    %v1946 = vpop.f32.mrb[0].mxu0
    %v1947 = vpop.f32.mrb[0].mxu0
    %1948 = vdwg.mxu0
    %v1949 = vmax.f32 %v1779, 0.0
    %v1950 = vmax.f32 %v1781, 0.0
    %v1951 = vmax.f32 %v1943, 0.0
    %v1952 = vmax.f32 %v1945, 0.0
    %v1953 = vpack.c.bf16 %v1949, %v1949
    %v1954 = vpack.c.bf16 %v1950, %v1950
    %v1955 = vpack.c.bf16 %v1951, %v1951
    %v1956 = vpack.c.bf16 %v1952, %v1952
    %v1957 = vld [vmem:[%s3] sm:$0xff]
    %v1958 = vld [vmem:[%s3 + $0x8] sm:$0xff]
    %v1959 = vld [vmem:[%s3 + $0x10] sm:$0xff]
    %v1960 = vld [vmem:[%s3 + $0x18] sm:$0xff]
    %v1961 = vld [vmem:[%s3 + $0x20] sm:$0xff]
    %v1962 = vld [vmem:[%s3 + $0x28] sm:$0xff]
    %v1963 = vld [vmem:[%s3 + $0x30] sm:$0xff]
    %v1964 = vld [vmem:[%s3 + $0x38] sm:$0xff]
    %v1965 = vld [vmem:[%s3 + $0x40] sm:$0xff]
    %v1966 = vld [vmem:[%s3 + $0x48] sm:$0xff]
    %v1967 = vld [vmem:[%s3 + $0x50] sm:$0xff]
    %v1968 = vld [vmem:[%s3 + $0x58] sm:$0xff]
    %v1969 = vld [vmem:[%s3 + $0x60] sm:$0xff]
    %v1970 = vld [vmem:[%s3 + $0x68] sm:$0xff]
    %v1971 = vld [vmem:[%s3 + $0x70] sm:$0xff]
    %v1972 = vld [vmem:[%s3 + $0x78] sm:$0xff]
    %v1973 = vld [vmem:[%s3 + $0x80] sm:$0xff]
    %v1974 = vld [vmem:[%s3 + $0x88] sm:$0xff]
    %v1975 = vld [vmem:[%s3 + $0x90] sm:$0xff]
    %v1976 = vld [vmem:[%s3 + $0x98] sm:$0xff]
    %v1977 = vld [vmem:[%s3 + $0xa0] sm:$0xff]
    %v1978 = vld [vmem:[%s3 + $0xa8] sm:$0xff]
    %v1979 = vld [vmem:[%s3 + $0xb0] sm:$0xff]
    %v1980 = vld [vmem:[%s3 + $0xb8] sm:$0xff]
    %v1981 = vld [vmem:[%s3 + $0xc0] sm:$0xff]
    %v1982 = vld [vmem:[%s3 + $0xc8] sm:$0xff]
    %v1983 = vld [vmem:[%s3 + $0xd0] sm:$0xff]
    %v1984 = vld [vmem:[%s3 + $0xd8] sm:$0xff]
    %v1985 = vld [vmem:[%s3 + $0xe0] sm:$0xff]
    %v1986 = vld [vmem:[%s3 + $0xe8] sm:$0xff]
    %v1987 = vld [vmem:[%s3 + $0xf0] sm:$0xff]
    %v1988 = vld [vmem:[%s3 + $0xf8] sm:$0xff]
    %v1989 = vld [vmem:[%s3 + $0x100] sm:$0xff]
    %v1990 = vld [vmem:[%s3 + $0x108] sm:$0xff]
    %v1991 = vld [vmem:[%s3 + $0x110] sm:$0xff]
    %v1992 = vld [vmem:[%s3 + $0x118] sm:$0xff]
    %v1993 = vld [vmem:[%s3 + $0x120] sm:$0xff]
    %v1994 = vld [vmem:[%s3 + $0x128] sm:$0xff]
    %v1995 = vld [vmem:[%s3 + $0x130] sm:$0xff]
    %v1996 = vld [vmem:[%s3 + $0x138] sm:$0xff]
    %v1997 = vld [vmem:[%s3 + $0x140] sm:$0xff]
    %v1998 = vld [vmem:[%s3 + $0x148] sm:$0xff]
    %v1999 = vld [vmem:[%s3 + $0x150] sm:$0xff]
    %v2000 = vld [vmem:[%s3 + $0x158] sm:$0xff]
    %v2001 = vld [vmem:[%s3 + $0x160] sm:$0xff]
    %v2002 = vld [vmem:[%s3 + $0x168] sm:$0xff]
    %v2003 = vld [vmem:[%s3 + $0x170] sm:$0xff]
    %v2004 = vld [vmem:[%s3 + $0x178] sm:$0xff]
    %v2005 = vld [vmem:[%s3 + $0x180] sm:$0xff]
    %v2006 = vld [vmem:[%s3 + $0x188] sm:$0xff]
    %v2007 = vld [vmem:[%s3 + $0x190] sm:$0xff]
    %v2008 = vld [vmem:[%s3 + $0x198] sm:$0xff]
    %v2009 = vld [vmem:[%s3 + $0x1a0] sm:$0xff]
    %v2010 = vld [vmem:[%s3 + $0x1a8] sm:$0xff]
    %v2011 = vld [vmem:[%s3 + $0x1b0] sm:$0xff]
    %v2012 = vld [vmem:[%s3 + $0x1b8] sm:$0xff]
    %v2013 = vld [vmem:[%s3 + $0x1c0] sm:$0xff]
    %v2014 = vld [vmem:[%s3 + $0x1c8] sm:$0xff]
    %v2015 = vld [vmem:[%s3 + $0x1d0] sm:$0xff]
    %v2016 = vld [vmem:[%s3 + $0x1d8] sm:$0xff]
    %v2017 = vld [vmem:[%s3 + $0x1e0] sm:$0xff]
    %v2018 = vld [vmem:[%s3 + $0x1e8] sm:$0xff]
    %v2019 = vld [vmem:[%s3 + $0x1f0] sm:$0xff]
    %v2020 = vld [vmem:[%s3 + $0x1f8] sm:$0xff]
    %v2021 = vld [vmem:[%s4] sm:$0x3]
    %v2023 = vlaneseq
    %v2024 = vshrl.u32 %v2023, 7
    %v2025 = vsub.s32 0, %v2024
    %v2026 = vrot.slane %v2021, %v2025
    %v2027 = vlaneseq
    %v2028 = vshrl.u32 %v2027, 7
    %v2029 = vsub.s32 1, %v2028
    %v2030 = vrot.slane %v2021, %v2029
    %v2097 = vunpack.c.l.b16 %v1957
    %v2098 = vunpack.c.h.b16 %v1957
    %v2099 = vunpack.c.l.b16 %v1958
    %v2100 = vunpack.c.h.b16 %v1958
    %v2101 = vunpack.c.l.b16 %v1959
    %v2102 = vunpack.c.h.b16 %v1959
    %v2103 = vunpack.c.l.b16 %v1960
    %v2104 = vunpack.c.h.b16 %v1960
    %v2105 = vunpack.c.l.b16 %v1961
    %v2106 = vunpack.c.h.b16 %v1961
    %v2107 = vunpack.c.l.b16 %v1962
    %v2108 = vunpack.c.h.b16 %v1962
    %v2109 = vunpack.c.l.b16 %v1963
    %v2110 = vunpack.c.h.b16 %v1963
    %v2111 = vunpack.c.l.b16 %v1964
    %v2112 = vunpack.c.h.b16 %v1964
    %v2113 = vunpack.c.l.b16 %v1965
    %v2114 = vunpack.c.h.b16 %v1965
    %v2115 = vunpack.c.l.b16 %v1966
    %v2116 = vunpack.c.h.b16 %v1966
    %v2117 = vunpack.c.l.b16 %v1967
    %v2118 = vunpack.c.h.b16 %v1967
    %v2119 = vunpack.c.l.b16 %v1968
    %v2120 = vunpack.c.h.b16 %v1968
    %v2121 = vunpack.c.l.b16 %v1969
    %v2122 = vunpack.c.h.b16 %v1969
    %v2123 = vunpack.c.l.b16 %v1970
    %v2124 = vunpack.c.h.b16 %v1970
    %v2125 = vunpack.c.l.b16 %v1971
    %v2126 = vunpack.c.h.b16 %v1971
    %v2127 = vunpack.c.l.b16 %v1972
    %v2128 = vunpack.c.h.b16 %v1972
    %v2129 = vunpack.c.l.b16 %v1973
    %v2130 = vunpack.c.h.b16 %v1973
    %v2131 = vunpack.c.l.b16 %v1974
    %v2132 = vunpack.c.h.b16 %v1974
    %v2133 = vunpack.c.l.b16 %v1975
    %v2134 = vunpack.c.h.b16 %v1975
    %v2135 = vunpack.c.l.b16 %v1976
    %v2136 = vunpack.c.h.b16 %v1976
    %v2137 = vunpack.c.l.b16 %v1977
    %v2138 = vunpack.c.h.b16 %v1977
    %v2139 = vunpack.c.l.b16 %v1978
    %v2140 = vunpack.c.h.b16 %v1978
    %v2141 = vunpack.c.l.b16 %v1979
    %v2142 = vunpack.c.h.b16 %v1979
    %v2143 = vunpack.c.l.b16 %v1980
    %v2144 = vunpack.c.h.b16 %v1980
    %v2145 = vunpack.c.l.b16 %v1981
    %v2146 = vunpack.c.h.b16 %v1981
    %v2147 = vunpack.c.l.b16 %v1982
    %v2148 = vunpack.c.h.b16 %v1982
    %v2149 = vunpack.c.l.b16 %v1983
    %v2150 = vunpack.c.h.b16 %v1983
    %v2151 = vunpack.c.l.b16 %v1984
    %v2152 = vunpack.c.h.b16 %v1984
    %v2153 = vunpack.c.l.b16 %v1985
    %v2154 = vunpack.c.h.b16 %v1985
    %v2155 = vunpack.c.l.b16 %v1986
    %v2156 = vunpack.c.h.b16 %v1986
    %v2157 = vunpack.c.l.b16 %v1987
    %v2158 = vunpack.c.h.b16 %v1987
    %v2159 = vunpack.c.l.b16 %v1988
    %v2160 = vunpack.c.h.b16 %v1988
    %v2161 = vunpack.c.l.b16 %v1989
    %v2162 = vunpack.c.h.b16 %v1989
    %v2163 = vunpack.c.l.b16 %v1990
    %v2164 = vunpack.c.h.b16 %v1990
    %v2165 = vunpack.c.l.b16 %v1991
    %v2166 = vunpack.c.h.b16 %v1991
    %v2167 = vunpack.c.l.b16 %v1992
    %v2168 = vunpack.c.h.b16 %v1992
    %v2169 = vunpack.c.l.b16 %v1993
    %v2170 = vunpack.c.h.b16 %v1993
    %v2171 = vunpack.c.l.b16 %v1994
    %v2172 = vunpack.c.h.b16 %v1994
    %v2173 = vunpack.c.l.b16 %v1995
    %v2174 = vunpack.c.h.b16 %v1995
    %v2175 = vunpack.c.l.b16 %v1996
    %v2176 = vunpack.c.h.b16 %v1996
    %v2177 = vunpack.c.l.b16 %v1997
    %v2178 = vunpack.c.h.b16 %v1997
    %v2179 = vunpack.c.l.b16 %v1998
    %v2180 = vunpack.c.h.b16 %v1998
    %v2181 = vunpack.c.l.b16 %v1999
    %v2182 = vunpack.c.h.b16 %v1999
    %v2183 = vunpack.c.l.b16 %v2000
    %v2184 = vunpack.c.h.b16 %v2000
    %v2185 = vunpack.c.l.b16 %v2001
    %v2186 = vunpack.c.h.b16 %v2001
    %v2187 = vunpack.c.l.b16 %v2002
    %v2188 = vunpack.c.h.b16 %v2002
    %v2189 = vunpack.c.l.b16 %v2003
    %v2190 = vunpack.c.h.b16 %v2003
    %v2191 = vunpack.c.l.b16 %v2004
    %v2192 = vunpack.c.h.b16 %v2004
    %v2193 = vunpack.c.l.b16 %v2005
    %v2194 = vunpack.c.h.b16 %v2005
    %v2195 = vunpack.c.l.b16 %v2006
    %v2196 = vunpack.c.h.b16 %v2006
    %v2197 = vunpack.c.l.b16 %v2007
    %v2198 = vunpack.c.h.b16 %v2007
    %v2199 = vunpack.c.l.b16 %v2008
    %v2200 = vunpack.c.h.b16 %v2008
    %v2201 = vunpack.c.l.b16 %v2009
    %v2202 = vunpack.c.h.b16 %v2009
    %v2203 = vunpack.c.l.b16 %v2010
    %v2204 = vunpack.c.h.b16 %v2010
    %v2205 = vunpack.c.l.b16 %v2011
    %v2206 = vunpack.c.h.b16 %v2011
    %v2207 = vunpack.c.l.b16 %v2012
    %v2208 = vunpack.c.h.b16 %v2012
    %v2209 = vunpack.c.l.b16 %v2013
    %v2210 = vunpack.c.h.b16 %v2013
    %v2211 = vunpack.c.l.b16 %v2014
    %v2212 = vunpack.c.h.b16 %v2014
    %v2213 = vunpack.c.l.b16 %v2015
    %v2214 = vunpack.c.h.b16 %v2015
    %v2215 = vunpack.c.l.b16 %v2016
    %v2216 = vunpack.c.h.b16 %v2016
    %v2217 = vunpack.c.l.b16 %v2017
    %v2218 = vunpack.c.h.b16 %v2017
    %v2219 = vunpack.c.l.b16 %v2018
    %v2220 = vunpack.c.h.b16 %v2018
    %v2221 = vunpack.c.l.b16 %v2019
    %v2222 = vunpack.c.h.b16 %v2019
    %v2223 = vunpack.c.l.b16 %v2020
    %v2224 = vunpack.c.h.b16 %v2020
    %v2225 = vpack.c.b16 %v2099, %v2097
    %v2226 = vpack.c.b16 %v2100, %v2098
    %v2227 = vpack.c.b16 %v2103, %v2101
    %v2228 = vpack.c.b16 %v2104, %v2102
    %v2229 = vpack.c.b16 %v2107, %v2105
    %v2230 = vpack.c.b16 %v2108, %v2106
    %v2231 = vpack.c.b16 %v2111, %v2109
    %v2232 = vpack.c.b16 %v2112, %v2110
    %v2233 = vpack.c.b16 %v2115, %v2113
    %v2234 = vpack.c.b16 %v2116, %v2114
    %v2235 = vpack.c.b16 %v2119, %v2117
    %v2236 = vpack.c.b16 %v2120, %v2118
    %v2237 = vpack.c.b16 %v2123, %v2121
    %v2238 = vpack.c.b16 %v2124, %v2122
    %v2239 = vpack.c.b16 %v2127, %v2125
    %v2240 = vpack.c.b16 %v2128, %v2126
    %v2241 = vpack.c.b16 %v2131, %v2129
    %v2242 = vpack.c.b16 %v2132, %v2130
    %v2243 = vpack.c.b16 %v2135, %v2133
    %v2244 = vpack.c.b16 %v2136, %v2134
    %v2245 = vpack.c.b16 %v2139, %v2137
    %v2246 = vpack.c.b16 %v2140, %v2138
    %v2247 = vpack.c.b16 %v2143, %v2141
    %v2248 = vpack.c.b16 %v2144, %v2142
    %v2249 = vpack.c.b16 %v2147, %v2145
    %v2250 = vpack.c.b16 %v2148, %v2146
    %v2251 = vpack.c.b16 %v2151, %v2149
    %v2252 = vpack.c.b16 %v2152, %v2150
    %v2253 = vpack.c.b16 %v2155, %v2153
    %v2254 = vpack.c.b16 %v2156, %v2154
    %v2255 = vpack.c.b16 %v2159, %v2157
    %v2256 = vpack.c.b16 %v2160, %v2158
    %v2257 = vpack.c.b16 %v2163, %v2161
    %v2258 = vpack.c.b16 %v2164, %v2162
    %v2259 = vpack.c.b16 %v2167, %v2165
    %v2260 = vpack.c.b16 %v2168, %v2166
    %v2261 = vpack.c.b16 %v2171, %v2169
    %v2262 = vpack.c.b16 %v2172, %v2170
    %v2263 = vpack.c.b16 %v2175, %v2173
    %v2264 = vpack.c.b16 %v2176, %v2174
    %v2265 = vpack.c.b16 %v2179, %v2177
    %v2266 = vpack.c.b16 %v2180, %v2178
    %v2267 = vpack.c.b16 %v2183, %v2181
    %v2268 = vpack.c.b16 %v2184, %v2182
    %v2269 = vpack.c.b16 %v2187, %v2185
    %v2270 = vpack.c.b16 %v2188, %v2186
    %v2271 = vpack.c.b16 %v2191, %v2189
    %v2272 = vpack.c.b16 %v2192, %v2190
    %v2273 = vpack.c.b16 %v2195, %v2193
    %v2274 = vpack.c.b16 %v2196, %v2194
    %v2275 = vpack.c.b16 %v2199, %v2197
    %v2276 = vpack.c.b16 %v2200, %v2198
    %v2277 = vpack.c.b16 %v2203, %v2201
    %v2278 = vpack.c.b16 %v2204, %v2202
    %v2279 = vpack.c.b16 %v2207, %v2205
    %v2280 = vpack.c.b16 %v2208, %v2206
    %v2281 = vpack.c.b16 %v2211, %v2209
    %v2282 = vpack.c.b16 %v2212, %v2210
    %v2283 = vpack.c.b16 %v2215, %v2213
    %v2284 = vpack.c.b16 %v2216, %v2214
    %v2285 = vpack.c.b16 %v2219, %v2217
    %v2286 = vpack.c.b16 %v2220, %v2218
    %v2287 = vpack.c.b16 %v2223, %v2221
    %v2288 = vpack.c.b16 %v2224, %v2222
    %2353 = vmatprep.subr.bf16.mxu0 %v2226
    %2354 = vmatpush1.bf16.msra.mxu0 %v2225
    %2355 = vmatprep.subr.bf16.mxu0 %v2228
    %2356 = vmatpush1.bf16.msra.mxu0 %v2227
    %2357 = vmatprep.subr.bf16.mxu0 %v2230
    %2358 = vmatpush1.bf16.msra.mxu0 %v2229
    %2359 = vmatprep.subr.bf16.mxu0 %v2232
    %2360 = vmatpush1.bf16.msra.mxu0 %v2231
    %2361 = vmatprep.subr.bf16.mxu0 %v2234
    %2362 = vmatpush1.bf16.msra.mxu0 %v2233
    %2363 = vmatprep.subr.bf16.mxu0 %v2236
    %2364 = vmatpush1.bf16.msra.mxu0 %v2235
    %2365 = vmatprep.subr.bf16.mxu0 %v2238
    %2366 = vmatpush1.bf16.msra.mxu0 %v2237
    %2367 = vmatprep.subr.bf16.mxu0 %v2240
    %2368 = vmatpush1.bf16.msra.mxu0 %v2239
    %2369 = vmatprep.subr.bf16.mxu0 %v2242
    %2370 = vmatpush1.bf16.msra.mxu0 %v2241
    %2371 = vmatprep.subr.bf16.mxu0 %v2244
    %2372 = vmatpush1.bf16.msra.mxu0 %v2243
    %2373 = vmatprep.subr.bf16.mxu0 %v2246
    %2374 = vmatpush1.bf16.msra.mxu0 %v2245
    %2375 = vmatprep.subr.bf16.mxu0 %v2248
    %2376 = vmatpush1.bf16.msra.mxu0 %v2247
    %2377 = vmatprep.subr.bf16.mxu0 %v2250
    %2378 = vmatpush1.bf16.msra.mxu0 %v2249
    %2379 = vmatprep.subr.bf16.mxu0 %v2252
    %2380 = vmatpush1.bf16.msra.mxu0 %v2251
    %2381 = vmatprep.subr.bf16.mxu0 %v2254
    %2382 = vmatpush1.bf16.msra.mxu0 %v2253
    %2383 = vmatprep.subr.bf16.mxu0 %v2256
    %2384 = vmatpush1.bf16.msra.mxu0 %v2255
    %2385 = vmatprep.mubr.bf16.mxu0 %v1954
    %2386 = vmatmul.mubr.bf16.gmra.mrb[0].mxu0 %v1953
    %v2387 = vpop.f32.mrb[0].mxu0
    %v2388 = vadd.f32 %v2026, %v2387
    %v2389 = vpop.f32.mrb[0].mxu0
    %v2390 = vadd.f32 %v2030, %v2389
    %v2391 = vpop.f32.mrb[0].mxu0
    %v2392 = vpop.f32.mrb[0].mxu0
    %2393 = vdwg.mxu0
    %2394 = vmatprep.subr.bf16.mxu0 %v2258
    %2395 = vmatpush1.bf16.msra.mxu0 %v2257
    %2396 = vmatprep.subr.bf16.mxu0 %v2260
    %2397 = vmatpush1.bf16.msra.mxu0 %v2259
    %2398 = vmatprep.subr.bf16.mxu0 %v2262
    %2399 = vmatpush1.bf16.msra.mxu0 %v2261
    %2400 = vmatprep.subr.bf16.mxu0 %v2264
    %2401 = vmatpush1.bf16.msra.mxu0 %v2263
    %2402 = vmatprep.subr.bf16.mxu0 %v2266
    %2403 = vmatpush1.bf16.msra.mxu0 %v2265
    %2404 = vmatprep.subr.bf16.mxu0 %v2268
    %2405 = vmatpush1.bf16.msra.mxu0 %v2267
    %2406 = vmatprep.subr.bf16.mxu0 %v2270
    %2407 = vmatpush1.bf16.msra.mxu0 %v2269
    %2408 = vmatprep.subr.bf16.mxu0 %v2272
    %2409 = vmatpush1.bf16.msra.mxu0 %v2271
    %2410 = vmatprep.subr.bf16.mxu0 %v2274
    %2411 = vmatpush1.bf16.msra.mxu0 %v2273
    %2412 = vmatprep.subr.bf16.mxu0 %v2276
    %2413 = vmatpush1.bf16.msra.mxu0 %v2275
    %2414 = vmatprep.subr.bf16.mxu0 %v2278
    %2415 = vmatpush1.bf16.msra.mxu0 %v2277
    %2416 = vmatprep.subr.bf16.mxu0 %v2280
    %2417 = vmatpush1.bf16.msra.mxu0 %v2279
    %2418 = vmatprep.subr.bf16.mxu0 %v2282
    %2419 = vmatpush1.bf16.msra.mxu0 %v2281
    %2420 = vmatprep.subr.bf16.mxu0 %v2284
    %2421 = vmatpush1.bf16.msra.mxu0 %v2283
    %2422 = vmatprep.subr.bf16.mxu0 %v2286
    %2423 = vmatpush1.bf16.msra.mxu0 %v2285
    %2424 = vmatprep.subr.bf16.mxu0 %v2288
    %2425 = vmatpush1.bf16.msra.mxu0 %v2287
    %2426 = vmatprep.mubr.bf16.mxu0 %v1956
    %2427 = vmatmul.mubr.bf16.gmra.mrb[0].mxu0 %v1955
    %v2428 = vpop.f32.mrb[0].mxu0
    %v2429 = vadd.f32 %v2388, %v2428
    %v2430 = vpop.f32.mrb[0].mxu0
    %v2431 = vadd.f32 %v2390, %v2430
    %v2432 = vpop.f32.mrb[0].mxu0
    %v2433 = vpop.f32.mrb[0].mxu0
    %2434 = vdwg.mxu0
    %v2435 = vmax.f32 %v2429, 0.0
    %v2436 = vmax.f32 %v2431, 0.0
    %v2437 = vpack.c.bf16 %v2435, %v2435
    %v2438 = vpack.c.bf16 %v2436, %v2436
    %v2439 = vld [vmem:[%s5] sm:$0xf]
    %v2440 = vld [vmem:[%s5 + $0x4] sm:$0xf]
    %v2441 = vld [vmem:[%s5 + $0x8] sm:$0xf]
    %v2442 = vld [vmem:[%s5 + $0xc] sm:$0xf]
    %v2443 = vld [vmem:[%s5 + $0x10] sm:$0xf]
    %v2444 = vld [vmem:[%s5 + $0x14] sm:$0xf]
    %v2445 = vld [vmem:[%s5 + $0x18] sm:$0xf]
    %v2446 = vld [vmem:[%s5 + $0x1c] sm:$0xf]
    %v2447 = vld [vmem:[%s5 + $0x20] sm:$0xf]
    %v2448 = vld [vmem:[%s5 + $0x24] sm:$0xf]
    %v2449 = vld [vmem:[%s5 + $0x28] sm:$0xf]
    %v2450 = vld [vmem:[%s5 + $0x2c] sm:$0xf]
    %v2451 = vld [vmem:[%s5 + $0x30] sm:$0xf]
    %v2452 = vld [vmem:[%s5 + $0x34] sm:$0xf]
    %v2453 = vld [vmem:[%s5 + $0x38] sm:$0xf]
    %v2454 = vld [vmem:[%s5 + $0x3c] sm:$0xf]
    %v2455 = vld [vmem:[%s5 + $0x40] sm:$0xf]
    %v2456 = vld [vmem:[%s5 + $0x44] sm:$0xf]
    %v2457 = vld [vmem:[%s5 + $0x48] sm:$0xf]
    %v2458 = vld [vmem:[%s5 + $0x4c] sm:$0xf]
    %v2459 = vld [vmem:[%s5 + $0x50] sm:$0xf]
    %v2460 = vld [vmem:[%s5 + $0x54] sm:$0xf]
    %v2461 = vld [vmem:[%s5 + $0x58] sm:$0xf]
    %v2462 = vld [vmem:[%s5 + $0x5c] sm:$0xf]
    %v2463 = vld [vmem:[%s5 + $0x60] sm:$0xf]
    %v2464 = vld [vmem:[%s5 + $0x64] sm:$0xf]
    %v2465 = vld [vmem:[%s5 + $0x68] sm:$0xf]
    %v2466 = vld [vmem:[%s5 + $0x6c] sm:$0xf]
    %v2467 = vld [vmem:[%s5 + $0x70] sm:$0xf]
    %v2468 = vld [vmem:[%s5 + $0x74] sm:$0xf]
    %v2469 = vld [vmem:[%s5 + $0x78] sm:$0xf]
    %v2470 = vld [vmem:[%s5 + $0x7c] sm:$0xf]
    %v2471 = vld [vmem:[%s6] sm:$0x1]
    %v2473 = vlaneseq
    %v2474 = vshrl.u32 %v2473, 7
    %v2475 = vsub.s32 0, %v2474
    %v2476 = vrot.slane %v2471, %v2475
    %v2510 = vunpack.c.l.b16 %v2439
    %v2511 = vunpack.c.l.b16 %v2440
    %v2512 = vunpack.c.l.b16 %v2441
    %v2513 = vunpack.c.l.b16 %v2442
    %v2514 = vunpack.c.l.b16 %v2443
    %v2515 = vunpack.c.l.b16 %v2444
    %v2516 = vunpack.c.l.b16 %v2445
    %v2517 = vunpack.c.l.b16 %v2446
    %v2518 = vunpack.c.l.b16 %v2447
    %v2519 = vunpack.c.l.b16 %v2448
    %v2520 = vunpack.c.l.b16 %v2449
    %v2521 = vunpack.c.l.b16 %v2450
    %v2522 = vunpack.c.l.b16 %v2451
    %v2523 = vunpack.c.l.b16 %v2452
    %v2524 = vunpack.c.l.b16 %v2453
    %v2525 = vunpack.c.l.b16 %v2454
    %v2526 = vunpack.c.l.b16 %v2455
    %v2527 = vunpack.c.l.b16 %v2456
    %v2528 = vunpack.c.l.b16 %v2457
    %v2529 = vunpack.c.l.b16 %v2458
    %v2530 = vunpack.c.l.b16 %v2459
    %v2531 = vunpack.c.l.b16 %v2460
    %v2532 = vunpack.c.l.b16 %v2461
    %v2533 = vunpack.c.l.b16 %v2462
    %v2534 = vunpack.c.l.b16 %v2463
    %v2535 = vunpack.c.l.b16 %v2464
    %v2536 = vunpack.c.l.b16 %v2465
    %v2537 = vunpack.c.l.b16 %v2466
    %v2538 = vunpack.c.l.b16 %v2467
    %v2539 = vunpack.c.l.b16 %v2468
    %v2540 = vunpack.c.l.b16 %v2469
    %v2541 = vunpack.c.l.b16 %v2470
    %v2542 = vpack.c.b16 %v2511, %v2510
    %v2543 = vpack.c.b16 %v2513, %v2512
    %v2544 = vpack.c.b16 %v2515, %v2514
    %v2545 = vpack.c.b16 %v2517, %v2516
    %v2546 = vpack.c.b16 %v2519, %v2518
    %v2547 = vpack.c.b16 %v2521, %v2520
    %v2548 = vpack.c.b16 %v2523, %v2522
    %v2549 = vpack.c.b16 %v2525, %v2524
    %v2550 = vpack.c.b16 %v2527, %v2526
    %v2551 = vpack.c.b16 %v2529, %v2528
    %v2552 = vpack.c.b16 %v2531, %v2530
    %v2553 = vpack.c.b16 %v2533, %v2532
    %v2554 = vpack.c.b16 %v2535, %v2534
    %v2555 = vpack.c.b16 %v2537, %v2536
    %v2556 = vpack.c.b16 %v2539, %v2538
    %v2557 = vpack.c.b16 %v2541, %v2540
    %2574 = vmatprep.subr.bf16.mxu0 0
    %2575 = vmatpush1.bf16.msra.mxu0 %v2542
    %2576 = vmatprep.subr.bf16.mxu0 0
    %2577 = vmatpush1.bf16.msra.mxu0 %v2543
    %2578 = vmatprep.subr.bf16.mxu0 0
    %2579 = vmatpush1.bf16.msra.mxu0 %v2544
    %2580 = vmatprep.subr.bf16.mxu0 0
    %2581 = vmatpush1.bf16.msra.mxu0 %v2545
    %2582 = vmatprep.subr.bf16.mxu0 0
    %2583 = vmatpush1.bf16.msra.mxu0 %v2546
    %2584 = vmatprep.subr.bf16.mxu0 0
    %2585 = vmatpush1.bf16.msra.mxu0 %v2547
    %2586 = vmatprep.subr.bf16.mxu0 0
    %2587 = vmatpush1.bf16.msra.mxu0 %v2548
    %2588 = vmatprep.subr.bf16.mxu0 0
    %2589 = vmatpush1.bf16.msra.mxu0 %v2549
    %2590 = vmatprep.subr.bf16.mxu0 0
    %2591 = vmatpush1.bf16.msra.mxu0 %v2550
    %2592 = vmatprep.subr.bf16.mxu0 0
    %2593 = vmatpush1.bf16.msra.mxu0 %v2551
    %2594 = vmatprep.subr.bf16.mxu0 0
    %2595 = vmatpush1.bf16.msra.mxu0 %v2552
    %2596 = vmatprep.subr.bf16.mxu0 0
    %2597 = vmatpush1.bf16.msra.mxu0 %v2553
    %2598 = vmatprep.subr.bf16.mxu0 0
    %2599 = vmatpush1.bf16.msra.mxu0 %v2554
    %2600 = vmatprep.subr.bf16.mxu0 0
    %2601 = vmatpush1.bf16.msra.mxu0 %v2555
    %2602 = vmatprep.subr.bf16.mxu0 0
    %2603 = vmatpush1.bf16.msra.mxu0 %v2556
    %2604 = vmatprep.subr.bf16.mxu0 0
    %2605 = vmatpush1.bf16.msra.mxu0 %v2557
    %2606 = vmatprep.mubr.bf16.mxu0 %v2438
    %2607 = vmatmul.mubr.bf16.gmra.mrb[0].mxu0 %v2437
    %v2608 = vpop.f32.mrb[0].mxu0
    %v2609 = vadd.f32 %v2476, %v2608
    %v2610 = vpop.f32.mrb[0].mxu0
    %v2611 = vpop.f32.mrb[0].mxu0
    %v2612 = vpop.f32.mrb[0].mxu0
    %2613 = vdwg.mxu0
    %v2614 = vmax.f32 %v2609, 0.0
    %v2615 = vpack.c.bf16 %v2614, %v2614
    %v2616 = vld [vmem:[%s7] sm:$0xf]
    %v2617 = vld [vmem:[%s7 + $0x4] sm:$0xf]
    %v2618 = vld [vmem:[%s7 + $0x8] sm:$0xf]
    %v2619 = vld [vmem:[%s7 + $0xc] sm:$0xf]
    %v2620 = vld [vmem:[%s7 + $0x10] sm:$0xf]
    %v2621 = vld [vmem:[%s7 + $0x14] sm:$0xf]
    %v2622 = vld [vmem:[%s7 + $0x18] sm:$0xf]
    %v2623 = vld [vmem:[%s7 + $0x1c] sm:$0xf]
    %v2624 = vld [vmem:[%s7 + $0x20] sm:$0xf]
    %v2625 = vld [vmem:[%s7 + $0x24] sm:$0xf]
    %v2626 = vld [vmem:[%s7 + $0x28] sm:$0xf]
    %v2627 = vld [vmem:[%s7 + $0x2c] sm:$0xf]
    %v2628 = vld [vmem:[%s7 + $0x30] sm:$0xf]
    %v2629 = vld [vmem:[%s7 + $0x34] sm:$0xf]
    %v2630 = vld [vmem:[%s7 + $0x38] sm:$0xf]
    %v2631 = vld [vmem:[%s7 + $0x3c] sm:$0xf]
    %v2632 = vld [vmem:[%s8] sm:$0x1]
    %v2634 = vlaneseq
    %v2635 = vshrl.u32 %v2634, 7
    %v2636 = vsub.s32 0, %v2635
    %v2637 = vrot.slane %v2632, %v2636
    %v2655 = vunpack.c.l.b16 %v2616
    %v2656 = vunpack.c.l.b16 %v2617
    %v2657 = vunpack.c.l.b16 %v2618
    %v2658 = vunpack.c.l.b16 %v2619
    %v2659 = vunpack.c.l.b16 %v2620
    %v2660 = vunpack.c.l.b16 %v2621
    %v2661 = vunpack.c.l.b16 %v2622
    %v2662 = vunpack.c.l.b16 %v2623
    %v2663 = vunpack.c.l.b16 %v2624
    %v2664 = vunpack.c.l.b16 %v2625
    %v2665 = vunpack.c.l.b16 %v2626
    %v2666 = vunpack.c.l.b16 %v2627
    %v2667 = vunpack.c.l.b16 %v2628
    %v2668 = vunpack.c.l.b16 %v2629
    %v2669 = vunpack.c.l.b16 %v2630
    %v2670 = vunpack.c.l.b16 %v2631
    %v2671 = vpack.c.b16 %v2656, %v2655
    %v2672 = vpack.c.b16 %v2658, %v2657
    %v2673 = vpack.c.b16 %v2660, %v2659
    %v2674 = vpack.c.b16 %v2662, %v2661
    %v2675 = vpack.c.b16 %v2664, %v2663
    %v2676 = vpack.c.b16 %v2666, %v2665
    %v2677 = vpack.c.b16 %v2668, %v2667
    %v2678 = vpack.c.b16 %v2670, %v2669
    %2687 = vmatprep.subr.bf16.mxu0 0
    %2688 = vmatpush1.bf16.msra.mxu0 %v2671
    %2689 = vmatprep.subr.bf16.mxu0 0
    %2690 = vmatpush1.bf16.msra.mxu0 %v2672
    %2691 = vmatprep.subr.bf16.mxu0 0
    %2692 = vmatpush1.bf16.msra.mxu0 %v2673
    %2693 = vmatprep.subr.bf16.mxu0 0
    %2694 = vmatpush1.bf16.msra.mxu0 %v2674
    %2695 = vmatprep.subr.bf16.mxu0 0
    %2696 = vmatpush1.bf16.msra.mxu0 %v2675
    %2697 = vmatprep.subr.bf16.mxu0 0
    %2698 = vmatpush1.bf16.msra.mxu0 %v2676
    %2699 = vmatprep.subr.bf16.mxu0 0
    %2700 = vmatpush1.bf16.msra.mxu0 %v2677
    %2701 = vmatprep.subr.bf16.mxu0 0
    %2702 = vmatpush1.bf16.msra.mxu0 %v2678
    %2703 = vmatprep.subr.bf16.mxu0 0
    %2704 = vmatpush1.bf16.msra.mxu0 0
    %2705 = vmatprep.subr.bf16.mxu0 0
    %2706 = vmatpush1.bf16.msra.mxu0 0
    %2707 = vmatprep.subr.bf16.mxu0 0
    %2708 = vmatpush1.bf16.msra.mxu0 0
    %2709 = vmatprep.subr.bf16.mxu0 0
    %2710 = vmatpush1.bf16.msra.mxu0 0
    %2711 = vmatprep.subr.bf16.mxu0 0
    %2712 = vmatpush1.bf16.msra.mxu0 0
    %2713 = vmatprep.subr.bf16.mxu0 0
    %2714 = vmatpush1.bf16.msra.mxu0 0
    %2715 = vmatprep.subr.bf16.mxu0 0
    %2716 = vmatpush1.bf16.msra.mxu0 0
    %2717 = vmatprep.subr.bf16.mxu0 0
    %2718 = vmatpush1.bf16.msra.mxu0 0
    %2719 = vmatprep.mubr.bf16.mxu0 0
    %2720 = vmatmul.mubr.bf16.gmra.mrb[0].mxu0 %v2615
    %v2721 = vpop.f32.mrb[0].mxu0
    %v2722 = vadd.f32 %v2637, %v2721
    %v2723 = vpop.f32.mrb[0].mxu0
    %v2724 = vpop.f32.mrb[0].mxu0
    %v2725 = vpop.f32.mrb[0].mxu0
    %2726 = vdwg.mxu0
    %2727 = vst [vmem:[%s9] sm:$0xff] %v2722
    // Predicated region
    $region42: #{model_vision_forward.1} parent=1 // pred_check
      _
    $region43: #{model_vision_forward.1} parent=1 // pred_check_branch
      %2729 = sbr.rel (0) target = $region45
    $region44: #{model_vision_forward.1} parent=1 // pred_region
      _
    $region45: #{model_vision_forward.1} parent=1 // pred_fallthru
      _
    // Predicated region
    $region46: #{model_vision_forward.1} parent=1 // pred_check
      _
    $region47: #{model_vision_forward.1} parent=1 // pred_check_branch
      %2731 = sbr.rel (0) target = $region49
    $region48: #{model_vision_forward.1} parent=1 // pred_region
      _
    $region49: #{model_vision_forward.1} parent=1 // pred_fallthru
      _
    %2732 = vsyncpa [#allocation3], 1

</llo_original>
